<compile_context>
chip_gen: v6e
topology: v6e:2x2x1
jax: 0.10.0
libtpu: 0.0.40
codegen_flags: <defaults>
</compile_context>

<pallas_src>
import functools

import jax
import jax.numpy as jnp
from jax.experimental import pallas as pl
from jax.experimental.pallas import tpu as pltpu


def _round_up(x, m):
    return ((x + m - 1) // m) * m


def _branch_matrices(supports, order):
    """[I_V, A_1^1..A_1^order, A_2^1..]  (matches PyTorch concat order)."""
    S, V, _ = supports.shape
    blocks = [jnp.eye(V, dtype=supports.dtype)]
    for s in range(S):
        A = supports[s]
        Ap = A
        blocks.append(Ap)
        for _ in range(2, order + 1):
            Ap = Ap @ A
            blocks.append(Ap)
    return blocks


def _stacked_adjacency_powers(supports, order, v_pad):
    """(S,V,V) -> (V, n_branch*v_pad); each branch block zero-padded to v_pad."""
    V = supports.shape[1]
    blocks = _branch_matrices(supports, order)
    if v_pad != V:
        blocks = [jnp.pad(b, ((0, 0), (0, v_pad - V))) for b in blocks]
    return jnp.concatenate(blocks, axis=1)


def _fused_operator(supports, weight, order, c_in):
    """M_T[(o,w),(c,v)] = sum_j weight[o, j*C+c] * A_j[v,w]  (small-V path)."""
    S, V, _ = supports.shape
    nb = order * S + 1
    C_out = weight.shape[0]
    B = jnp.stack(_branch_matrices(supports, order), axis=0)      # (nb, V, V)
    Wr = weight.reshape(C_out, nb, c_in)                          # (o, j, c)
    m_T = jnp.einsum('ojc,jvw->owcv', Wr, B)                      # (o, w, c, v)
    return m_T.reshape(C_out * V, c_in * V)


# ---------------------------------------------------------------------------
# Kernel A: small-graph fused path -- one MXU matmul per grid step.
# ---------------------------------------------------------------------------
def _gcn_fused_kernel(x_ref, m_ref, b_ref, o_ref, *, compute_dtype):
    # x_ref: (TB, C, V, L)   m_ref: (C_out*V, C*V)   b_ref: (C_out*V, 1)
    # o_ref: (TB, C_out, V*L)
    TB, C, V, L = x_ref.shape
    C_out = m_ref.shape[0] // V

    x = x_ref[...].astype(compute_dtype)          # (TB, C, V, L)
    x = jnp.swapaxes(x, 0, 1)                     # (C, TB, V, L)  outer swap
    x = jnp.swapaxes(x, 1, 2)                     # (C, V, TB, L)  outer swap
    xm = x.reshape(C * V, TB * L)                 # rows (c,v), cols (b,l)

    # graph conv + 1x1 conv in a single matmul, bias folded in.
    y = jnp.dot(m_ref[...], xm, preferred_element_type=jnp.float32)
    y = y + b_ref[...]                            # rows (o,w)

    y = y.reshape(C_out, V, TB, L)
    y = jnp.swapaxes(y, 1, 2)                     # (C_out, TB, V, L)
    y = jnp.swapaxes(y, 0, 1)                     # (TB, C_out, V, L)
    o_ref[...] = y.reshape(TB, C_out, V * L).astype(o_ref.dtype)  # one store


# ---------------------------------------------------------------------------
# Kernel B: general two-stage path -- two large matmuls per grid step.
# ---------------------------------------------------------------------------
def _gcn_two_stage_kernel(x_ref, a_ref, w_ref, b_ref, o_ref, *,
                          n_branch, v_pad, compute_dtype):
    # x_ref: (TB, C, V, L)            a_ref: (V, n_branch*Vp)  (branch-padded)
    # w_ref: (C_out, n_branch*C)      b_ref: (C_out, 1)
    # o_ref: (TB, C_out, V*L)
    TB, C, V, L = x_ref.shape
    C_out = w_ref.shape[0]
    Vp = v_pad

    # ---- stage 1: graph conv as ONE wide MXU matmul ----------------------
    # Put the node dim on the lanes once (batched minor transpose, XLU).
    x = x_ref[...].astype(compute_dtype)          # (TB, C, V, L)
    x = jnp.swapaxes(x, 0, 1)                     # (C, TB, V, L)
    x = jnp.swapaxes(x, -1, -2)                   # (C, TB, L, V)
    x_flat = x.reshape(C * TB * L, V)             # rows (c,b,l), cols v
    # z rows (c,b,l), cols (branch, node) -- branch blocks are 128-aligned.
    z = jnp.dot(x_flat, a_ref[...], preferred_element_type=jnp.float32)
    z = z.astype(compute_dtype)

    # ---- single relayout of the intermediate:  (c,b,l)x(j,w) -> (j,c)x(b,l,w)
    # Lane dim (Vp, multiple of 128) is untouched -> no lane-crossing shuffles.
    z5 = z.reshape(C, TB, L, n_branch, Vp)
    h = jnp.transpose(z5, (3, 0, 1, 2, 4))        # (nb, C, TB, L, Vp)
    h2 = h.reshape(n_branch * C, TB * L * Vp)

    # ---- stage 2: 1x1 conv over ALL branches at once (K = n_branch*C) ----
    y = jnp.dot(w_ref[...], h2, preferred_element_type=jnp.float32)
    y = y + b_ref[...]                            # bias folded, rows = C_out

    # ---- batched epilogue: cols (b,l,w) -> NCHW-flat, one store ----------
    y = y.reshape(C_out, TB, L, Vp)
    y = jnp.swapaxes(y, -1, -2)                   # (C_out, TB, Vp, L)
    y = y[:, :, :V, :]                            # drop branch padding
    y = jnp.swapaxes(y, 0, 1)                     # (TB, C_out, V, L)
    o_ref[...] = y.reshape(TB, C_out, V * L).astype(o_ref.dtype)


def _pick_batch_block(N, cap, est_fn, budget):
    cap = max(1, min(cap, N))
    if N >= 2:
        cap = min(cap, max(1, N // 2))   # >=2 grid steps -> both v7x TCs busy
    for tb in range(cap, 0, -1):
        if N % tb == 0 and est_fn(tb) <= budget:
            return tb
    return 1


def gcn_forward(x, supports, weight, bias, *, order=2, batch_block=None,
                compute_dtype=jnp.float32, fuse_small_graph=None,
                vmem_budget_bytes=40 * 1024 * 1024, vmem_limit_bytes=None):
    """x: (N, C, V, L) NCHW.  supports: (S, V, V).
    weight: (C_out, (order*S+1)*C).  bias: (C_out,).  Returns (N, C_out, V, L)."""
    N, C, V, L = x.shape
    S = supports.shape[0]
    nb = order * S + 1
    C_out = weight.shape[0]
    assert weight.shape == (C_out, nb * C)
    assert bias.shape == (C_out,)

    out_dtype = x.dtype
    cds = jnp.dtype(compute_dtype).itemsize
    in_b = jnp.dtype(x.dtype).itemsize
    out_b = jnp.dtype(out_dtype).itemsize

    if fuse_small_graph is None:
        fuse_small_graph = (V <= 64 and
                            (C * V) * (C_out * V) * cds <= 4 * 1024 * 1024)

    if fuse_small_graph:
        # ---- small-V path: one fused operator, one matmul per step --------
        m_T = _fused_operator(supports, weight, order, C).astype(compute_dtype)
        b_ow = jnp.repeat(bias.astype(jnp.float32), V).reshape(C_out * V, 1)

        def est(tb):
            blocks = (2 * tb * C * V * L * in_b + 2 * tb * C_out * V * L * out_b +
                      2 * (C_out * V) * (C * V) * cds + 2 * C_out * V * 4)
            tmp = 2 * tb * C * V * L * cds + 3 * C_out * V * tb * L * 4
            return int(1.2 * (blocks + tmp))

        cap = batch_block if batch_block is not None else 8
        tb = _pick_batch_block(N, cap, est, vmem_budget_bytes)
        kern = functools.partial(_gcn_fused_kernel, compute_dtype=compute_dtype)
        operands = (x, m_T, b_ow)
        in_specs = [
            pl.BlockSpec((tb, C, V, L), lambda n: (n, 0, 0, 0)),
            pl.BlockSpec((C_out * V, C * V), lambda n: (0, 0)),
            pl.BlockSpec((C_out * V, 1), lambda n: (0, 0)),
        ]
        est_bytes = est(tb)
    else:
        # ---- general path: two well-shaped matmuls per step ----------------
        Vp = _round_up(V, 128)                       # lane-align branch blocks
        a_stk = _stacked_adjacency_powers(supports, order, Vp).astype(compute_dtype)
        w_cd = weight.astype(compute_dtype)
        b2d = bias.astype(jnp.float32).reshape(C_out, 1)

        def est(tb):
            blocks = (2 * tb * C * V * L * in_b + 2 * tb * C_out * V * L * out_b +
                      2 * V * nb * Vp * cds + 2 * C_out * nb * C * cds + 2 * C_out * 4)
            x_tmp = 2 * tb * C * V * L * cds
            z_all = tb * C * L * nb * Vp * (4 + 2 * cds)   # z(f32) + zc + h2
            y2 = C_out * tb * L * Vp * 4
            epi = 3 * tb * C_out * V * L * 4
            return int(1.15 * (blocks + x_tmp + z_all + y2 + epi))

        cap = batch_block if batch_block is not None else 4
        tb = _pick_batch_block(N, cap, est, vmem_budget_bytes)
        kern = functools.partial(_gcn_two_stage_kernel, n_branch=nb, v_pad=Vp,
                                 compute_dtype=compute_dtype)
        operands = (x, a_stk, w_cd, b2d)
        in_specs = [
            pl.BlockSpec((tb, C, V, L), lambda n: (n, 0, 0, 0)),
            pl.BlockSpec((V, nb * Vp), lambda n: (0, 0)),
            pl.BlockSpec((C_out, nb * C), lambda n: (0, 0)),
            pl.BlockSpec((C_out, 1), lambda n: (0, 0)),
        ]
        est_bytes = est(tb)

    if vmem_limit_bytes is None:
        # Explicit scoped-VMEM limit (review: v7x has 64 MiB physical).
        vmem_limit_bytes = min(max(est_bytes + (16 << 20), 32 << 20), 60 << 20)

    out_flat = pl.pallas_call(
        kern,
        out_shape=jax.ShapeDtypeStruct((N, C_out, V * L), out_dtype),
        grid_spec=pltpu.PrefetchScalarGridSpec(
            num_scalar_prefetch=0,
            grid=(N // tb,),
            in_specs=in_specs,
            out_specs=pl.BlockSpec((tb, C_out, V * L), lambda n: (n, 0, 0)),
        ),
        compiler_params=pltpu.CompilerParams(
            dimension_semantics=("parallel",),
            vmem_limit_bytes=vmem_limit_bytes),
    )(*operands)

    # Free reshape back to the PyTorch NCHW layout.
    return out_flat.reshape(N, C_out, V, L)


def gcn_reference(x, supports, weight, bias, *, order=2):
    """Pure-JAX reference mirroring the PyTorch module (eval mode)."""
    out = [x]
    for s in range(supports.shape[0]):
        A = supports[s]
        x1 = jnp.einsum('ncvl,vw->ncwl', x, A)
        out.append(x1)
        for _ in range(2, order + 1):
            x2 = jnp.einsum('ncvl,vw->ncwl', x1, A)
            out.append(x2)
            x1 = x2
    h = jnp.concatenate(out, axis=1)
    return jnp.einsum('oc,ncvl->novl', weight, h) + bias[None, :, None, None]


if __name__ == "__main__":
    # Small shapes consistent with the module: batch=4, c_in=4, nodes=8, time=12
    N, C_in, V, L = 4, 4, 8, 12
    support_len, order = 3, 2
    C_out = 8
    C_total = (order * support_len + 1) * C_in            # 7 * 4 = 28

    key = jax.random.PRNGKey(0)
    kx, ka, kw, kb = jax.random.split(key, 4)
    x = jax.random.normal(kx, (N, C_in, V, L), dtype=jnp.float32)
    supports = jax.random.uniform(ka, (support_len, V, V), dtype=jnp.float32)
    supports = supports / jnp.sum(supports, axis=-1, keepdims=True)
    weight = jax.random.normal(kw, (C_out, C_total), dtype=jnp.float32) * 0.1
    bias = jax.random.normal(kb, (C_out,), dtype=jnp.float32) * 0.1

    y_ref = gcn_reference(x, supports, weight, bias, order=order)

    # Small-graph fused path (auto-selected for V=8); batch_block=2 -> 2 grid steps.
    y_fused = gcn_forward(x, supports, weight, bias, order=order, batch_block=2)
    y_fused = jax.block_until_ready(y_fused)
    assert y_fused.shape == (N, C_out, V, L)
    assert jnp.allclose(y_fused, y_ref, atol=2e-4, rtol=2e-4), "fused path mismatch"

    # General two-stage path (used for large graphs) -- forced here for coverage.
    y_gen = gcn_forward(x, supports, weight, bias, order=order, batch_block=2,
                        fuse_small_graph=False)
    y_gen = jax.block_until_ready(y_gen)
    assert jnp.allclose(y_gen, y_ref, atol=2e-4, rtol=2e-4), "two-stage path mismatch"

    print("KERNEL_OK")
</pallas_src>

<mosaic_0001>
module attributes {stable_mosaic.version = 11 : i64} {
  func.func @_gcn_fused_kernel(%arg0: i32, %arg1: memref<2x4x8x12xf32, #tpu.memory_space<vmem>>, %arg2: memref<64x32xf32, #tpu.memory_space<vmem>>, %arg3: memref<64x1xf32, #tpu.memory_space<vmem>>, %arg4: memref<2x8x96xf32, #tpu.memory_space<vmem>>) attributes {dimension_semantics = [#tpu.dimension_semantics<parallel>], iteration_bounds = array<i64: 2>, scalar_prefetch = 0 : i64, scratch_operands = 0 : i64, tpu.core_type = #tpu.core_type<tc>, window_params = [{transform_indices = @transform_0, window_bounds = array<i64: 2, 4, 8, 12>}, {pipeline_mode = #tpu.pipeline_mode<synchronous>, transform_indices = @transform_1, window_bounds = array<i64: 64, 32>}, {pipeline_mode = #tpu.pipeline_mode<synchronous>, transform_indices = @transform_2, window_bounds = array<i64: 64, 1>}, {transform_indices = @transform_3, window_bounds = array<i64: 2, 8, 96>}]} {
    %c0 = arith.constant 0 : index
    %c0_0 = arith.constant 0 : index
    %c0_1 = arith.constant 0 : index
    %c0_2 = arith.constant 0 : index
    %0 = vector.load %arg1[%c0, %c0_0, %c0_1, %c0_2] : memref<2x4x8x12xf32, #tpu.memory_space<vmem>>, vector<2x4x8x12xf32>
    %1 = tpu.transpose %0, [1, 0, 2, 3] : vector<2x4x8x12xf32> -> vector<4x2x8x12xf32>
    %2 = tpu.transpose %1, [0, 2, 1, 3] : vector<4x2x8x12xf32> -> vector<4x8x2x12xf32>
    %3 = vector.shape_cast %2 : vector<4x8x2x12xf32> to vector<32x24xf32>
    %c0_3 = arith.constant 0 : index
    %c0_4 = arith.constant 0 : index
    %4 = vector.load %arg2[%c0_3, %c0_4] : memref<64x32xf32, #tpu.memory_space<vmem>>, vector<64x32xf32>
    %cst = arith.constant dense<0.000000e+00> : vector<64x24xf32>
    %5 = tpu.matmul %4, %3, %cst {dimension_numbers = #tpu.dot_dimension_numbers<[1], [0], [0], [1], [0, 0, 1, 1], [], []>} : vector<64x32xf32>, vector<32x24xf32>, vector<64x24xf32> -> vector<64x24xf32>
    %c0_5 = arith.constant 0 : index
    %c0_6 = arith.constant 0 : index
    %6 = vector.load %arg3[%c0_5, %c0_6] : memref<64x1xf32, #tpu.memory_space<vmem>>, vector<64x1xf32>
    %7 = vector.broadcast %6 : vector<64x1xf32> to vector<64x24xf32>
    %8 = arith.addf %5, %7 : vector<64x24xf32>
    %9 = vector.shape_cast %8 : vector<64x24xf32> to vector<8x8x2x12xf32>
    %10 = tpu.transpose %9, [0, 2, 1, 3] : vector<8x8x2x12xf32> -> vector<8x2x8x12xf32>
    %11 = tpu.transpose %10, [1, 0, 2, 3] : vector<8x2x8x12xf32> -> vector<2x8x8x12xf32>
    %12 = vector.shape_cast %11 : vector<2x8x8x12xf32> to vector<2x8x96xf32>
    %c0_7 = arith.constant 0 : index
    %c0_8 = arith.constant 0 : index
    %c0_9 = arith.constant 0 : index
    %13 = vector.load %arg4[%c0_7, %c0_8, %c0_9] : memref<2x8x96xf32, #tpu.memory_space<vmem>>, vector<2x8x96xf32>
    tpu.vector_store %arg4[%c0_7, %c0_8, %c0_9], %12 {strides = array<i32>} : memref<2x8x96xf32, #tpu.memory_space<vmem>>, vector<2x8x96xf32>,
    return
  }
  func.func @transform_0(%arg0: i32) -> (i32, i32, i32, i32) {
    %c0_i32 = arith.constant 0 : i32
    %c0_i32_0 = arith.constant 0 : i32
    %c0_i32_1 = arith.constant 0 : i32
    %c0_i32_2 = arith.constant 0 : i32
    return %arg0, %c0_i32, %c0_i32_0, %c0_i32_1 : i32, i32, i32, i32
  }
  func.func @transform_1(%arg0: i32) -> (i32, i32) {
    %c0_i32 = arith.constant 0 : i32
    %c0_i32_0 = arith.constant 0 : i32
    %c0_i32_1 = arith.constant 0 : i32
    return %c0_i32, %c0_i32_0 : i32, i32
  }
  func.func @transform_2(%arg0: i32) -> (i32, i32) {
    %c0_i32 = arith.constant 0 : i32
    %c0_i32_0 = arith.constant 0 : i32
    %c0_i32_1 = arith.constant 0 : i32
    return %c0_i32, %c0_i32_0 : i32, i32
  }
  func.func @transform_3(%arg0: i32) -> (i32, i32, i32) {
    %c0_i32 = arith.constant 0 : i32
    %c0_i32_0 = arith.constant 0 : i32
    %c0_i32_1 = arith.constant 0 : i32
    return %arg0, %c0_i32, %c0_i32_0 : i32, i32, i32
  }
}

</mosaic_0001>

<llo_original>
// kernel: tpu_custom_call.1
$region0: #{tpu_custom_call.1}
  #allocation0 [shape = 'u32[]', space=smem, size = 0x4, offset = 0x4, fixed_abs, tag = 'smem constant byte address 0x4 - core index']
  #allocation1 [shape = 'u32[144,128]{1,0:T(1,128)}', space=vmem, size = 0x12000, scoped, tag = 'internal scratch']
  %s0 = inlined_call_operand.vmem [shape: f32[4,4,8,12], index: 0, kind: input, shape index: {}]
  %s1 = inlined_call_operand.vmem [shape: f32[64,32], index: 1, kind: input, shape index: {}]
  %s2 = inlined_call_operand.vmem [shape: f32[64,1], index: 2, kind: input, shape index: {}]
  %s3 = inlined_call_operand.hbm [shape: f32[4,8,96], index: 3, kind: output, shape index: {}]
  %s4 = sld [smem:[#allocation0]]
  $region45: #{tpu_custom_call.1} parent=0
    _
  %s6 = ssub.s32 1, %s4
  %s7 = scalar_select 0, %s6, %s4
  $region1: #{tpu_custom_call.1} parent=0
    #allocation2 [shape = 'u8[16384]{0}', space=vmem, size = 0x4000, scoped, tag = 'output window, operand 0']
    #allocation3 [shape = 's32[2]{0}', space=sflag, size = 0x8, scoped, tag = 'scoped memory for tpu_custom_call.1']
    %8 = vsyncpa [#allocation3], 0
    %s9 = scalar_lea.sflag [#allocation3], 1
    %10 = vsyncpa %s9, 0
    loop: start=0, step=1, limit=4
    $region2: #{tpu_custom_call.1} parent=1 // loop_pre_header
      _
    $region3: #{tpu_custom_call.1} parent=1 // loop_header
      %s12 = sphi 0, %s16
      %p13 = scmp.ge.s32.totalorder %s12, 4
      %s22 = sphi 0, %s24
      %s25 = sphi 0, %s22
      %s26 = sphi 0, %s25
      %s42 = sphi 0, %s26
      %s46 = sphi 0, %s46
      %s48 = sphi 0, %s46
      %s49 = sphi 0, %s48
      %s63 = sphi 0, %s49
      %s67 = sphi 0, %s67
      %s69 = sphi 0, %s67
      %s70 = sphi 0, %s69
      %s84 = sphi 0, %s70
      %s90 = sphi 0, %s92
      %s93 = sphi 0, %s90
      %s94 = sphi 0, %s93
      %s110 = sphi 0, %s94
    $region4: #{tpu_custom_call.1} parent=1 // loop_header_branch
      %15 = sbr.rel (%p13) target = $region8
    $region5: #{tpu_custom_call.1} parent=1 // loop_body
      %s17 = ssub.s32 %s12, 1
      %s18 = ssub.s32 %s12, 2
      %s19 = sadd.s32 %s12, 1
      %s20 = ssub.s32 %s12, %s19
      %p21 = scmp.eq.s32.totalorder %s20, 0
      %s23 = sadd.s32 %s22, 1
      %s24 = scalar_select %p21, %s22, %s23
      %p27 = pneg %p21
      %p28 = scmp.eq.s32.totalorder %s12, 1
      %p29 = por %p27, %p28
      %p30 = scmp.ne.s32.totalorder %s22, %s25
      %p31 = scmp.eq.s32.totalorder %s12, 0
      %p32 = por %p30, %p31
      %p33 = scmp.ne.s32.totalorder %s22, %s25
      %p34 = scmp.eq.s32.totalorder %s17, 1
      %p35 = por %p33, %p34
      %p36 = scmp.ne.s32.totalorder %s25, %s26
      %p37 = scmp.eq.s32.totalorder %s17, 0
      %p38 = por %p36, %p37
      %p39 = scmp.ne.s32.totalorder %s25, %s26
      %p40 = scmp.eq.s32.totalorder %s18, 1
      %p41 = por %p39, %p40
      %p43 = scmp.ne.s32.totalorder %s26, %s42
      %p44 = scmp.eq.s32.totalorder %s18, 0
      %p45 = por %p43, %p44
      %s47 = sadd.s32 %s46, 1
      %p50 = scmp.eq.s32.totalorder %s12, 1
      %p51 = scmp.ne.s32.totalorder %s46, %s48
      %p52 = scmp.eq.s32.totalorder %s12, 0
      %p53 = por %p51, %p52
      %p54 = scmp.ne.s32.totalorder %s46, %s48
      %p55 = scmp.eq.s32.totalorder %s17, 1
      %p56 = por %p54, %p55
      %p57 = scmp.ne.s32.totalorder %s48, %s49
      %p58 = scmp.eq.s32.totalorder %s17, 0
      %p59 = por %p57, %p58
      %p60 = scmp.ne.s32.totalorder %s48, %s49
      %p61 = scmp.eq.s32.totalorder %s18, 1
      %p62 = por %p60, %p61
      %p64 = scmp.ne.s32.totalorder %s49, %s63
      %p65 = scmp.eq.s32.totalorder %s18, 0
      %p66 = por %p64, %p65
      %s68 = sadd.s32 %s67, 1
      %p71 = scmp.eq.s32.totalorder %s12, 1
      %p72 = scmp.ne.s32.totalorder %s67, %s69
      %p73 = scmp.eq.s32.totalorder %s12, 0
      %p74 = por %p72, %p73
      %p75 = scmp.ne.s32.totalorder %s67, %s69
      %p76 = scmp.eq.s32.totalorder %s17, 1
      %p77 = por %p75, %p76
      %p78 = scmp.ne.s32.totalorder %s69, %s70
      %p79 = scmp.eq.s32.totalorder %s17, 0
      %p80 = por %p78, %p79
      %p81 = scmp.ne.s32.totalorder %s69, %s70
      %p82 = scmp.eq.s32.totalorder %s18, 1
      %p83 = por %p81, %p82
      %p85 = scmp.ne.s32.totalorder %s70, %s84
      %p86 = scmp.eq.s32.totalorder %s18, 0
      %p87 = por %p85, %p86
      %s88 = ssub.s32 %s12, %s19
      %p89 = scmp.eq.s32.totalorder %s88, 0
      %s91 = sadd.s32 %s90, 1
      %s92 = scalar_select %p89, %s90, %s91
      %p95 = pneg %p89
      %p96 = scmp.eq.s32.totalorder %s12, 1
      %p97 = por %p95, %p96
      %p98 = scmp.ne.s32.totalorder %s90, %s93
      %p99 = scmp.eq.s32.totalorder %s12, 0
      %p100 = por %p98, %p99
      %p101 = scmp.ne.s32.totalorder %s90, %s93
      %p102 = scmp.eq.s32.totalorder %s17, 1
      %p103 = por %p101, %p102
      %p104 = scmp.ne.s32.totalorder %s93, %s94
      %p105 = scmp.eq.s32.totalorder %s17, 0
      %p106 = por %p104, %p105
      %p107 = scmp.ne.s32.totalorder %s93, %s94
      %p108 = scmp.eq.s32.totalorder %s18, 1
      %p109 = por %p107, %p108
      %p111 = scmp.ne.s32.totalorder %s94, %s110
      %p112 = scmp.eq.s32.totalorder %s18, 0
      %p113 = por %p111, %p112
      %p114 = scmp.le.s32.totalorder 1, %s12
      %p115 = scmp.lt.s32.totalorder %s12, 3
      %p116 = pnand %p114, %p115
      %p117 = pneg %p116
      // Predicated region
      $region9: #{tpu_custom_call.1} parent=5 // pred_check
        _
      $region10: #{tpu_custom_call.1} parent=5 // pred_check_branch
        %119 = sbr.rel (%p116) target = $region12
      $region11: #{tpu_custom_call.1} parent=5 // pred_region
        %s120 = ssub.s32 %s12, 1
        // Predicated region
        $region13: #{tpu_custom_call.1} parent=11 // pred_check
          %p121 = pneg %p59
        $region14: #{tpu_custom_call.1} parent=11 // pred_check_branch
          %123 = sbr.rel (%p121) target = $region16
        $region15: #{tpu_custom_call.1} parent=11 // pred_region
          _
        $region16: #{tpu_custom_call.1} parent=11 // pred_fallthru
          _
        // Predicated region
        $region17: #{tpu_custom_call.1} parent=11 // pred_check
          %p124 = pneg %p80
        $region18: #{tpu_custom_call.1} parent=11 // pred_check_branch
          %126 = sbr.rel (%p124) target = $region20
        $region19: #{tpu_custom_call.1} parent=11 // pred_region
          _
        $region20: #{tpu_custom_call.1} parent=11 // pred_fallthru
          _
      $region12: #{tpu_custom_call.1} parent=5 // pred_fallthru
        _
      %p127 = scmp.lt.s32.totalorder %s12, 2
      // Predicated region
      $region21: #{tpu_custom_call.1} parent=5 // pred_check
        %p128 = pneg %p127
      $region22: #{tpu_custom_call.1} parent=5 // pred_check_branch
        %130 = sbr.rel (%p128) target = $region24
      $region23: #{tpu_custom_call.1} parent=5 // pred_region
        // Predicated region
        $region25: #{tpu_custom_call.1} parent=23 // pred_check
          %p131 = pneg %p32
        $region26: #{tpu_custom_call.1} parent=23 // pred_check_branch
          %133 = sbr.rel (%p131) target = $region28
        $region27: #{tpu_custom_call.1} parent=23 // pred_region
          %s134 = smul.u32 2, %s12
          %p135 = scmp.lt.s32.totalorder %s134, 3
          %s136 = scalar_select %p135, %s134, 3
          %s137 = smul.addr %s136, 4
          %s138 = smul.addr %s137, 8
          %s139 = scalar_lea.vmem %s0, %s138
          %s140 = smul.u32 2, %s12
        $region28: #{tpu_custom_call.1} parent=23 // pred_fallthru
          _
      $region24: #{tpu_custom_call.1} parent=5 // pred_fallthru
        _
      %p141 = scmp.le.s32.totalorder 1, %s12
      %p142 = scmp.lt.s32.totalorder %s12, 3
      %p143 = pnand %p141, %p142
      %p144 = pneg %p143
      // Predicated region
      $region29: #{tpu_custom_call.1} parent=5 // pred_check
        _
      $region30: #{tpu_custom_call.1} parent=5 // pred_check_branch
        %146 = sbr.rel (%p143) target = $region32
      $region31: #{tpu_custom_call.1} parent=5 // pred_region
        %s147 = ssub.s32 %s12, 1
        %s148 = smul.u32 2, %s17
        %p149 = scmp.lt.s32.totalorder %s148, 3
        %s150 = scalar_select %p149, %s148, 3
        %s151 = smul.addr %s150, 4
        %s152 = smul.addr %s151, 8
        %s153 = scalar_lea.vmem %s0, %s152
        %p154 = pneg %p38
        %p155 = pneg %p35
        %p156 = pneg %p59
        %p157 = pneg %p56
        %p158 = pneg %p80
        %p159 = pneg %p77
        %p160 = pneg %p106
        %p161 = pneg %p103
        %s162 = sand.u32 %s93, 1
        %s163 = scalar_lea.sflag [#allocation3], %s162
        %s164 = sand.u32 %s93, 1
        %s165 = smul.addr %s164, 16
        %s166 = scalar_lea.vmem [#allocation2], %s165
        %s167 = smul.u32 2, %s17
        %p168 = scmp.lt.s32.totalorder %s167, 3
        %s169 = scalar_select %p168, %s167, 3
        %s170 = smul.addr %s169, 4
        %s171 = smul.addr %s170, 8
        %s172 = scalar_lea.vmem %s0, %s171
        %s173 = smul.u32 2, %s17
        %s174 = smul.u32 2, %s17
        %v175 = vld [vmem:[%s172] sm:$0xff]
        %v176 = vld [vmem:[%s172 + $0x8] sm:$0xff]
        %v177 = vld [vmem:[%s172 + $0x10] sm:$0xff]
        %v178 = vld [vmem:[%s172 + $0x18] sm:$0xff]
        %v179 = vld [vmem:[%s172 + $0x20] sm:$0xff]
        %v180 = vld [vmem:[%s172 + $0x28] sm:$0xff]
        %v181 = vld [vmem:[%s172 + $0x30] sm:$0xff]
        %v182 = vld [vmem:[%s172 + $0x38] sm:$0xff]
        %v183 = vcombine.high %v175, 0.0
        %v185 = vunpack.c.l.s4 1983009808
        %v186 = vunpack.c.0.s8 %v185
        %v187 = vlaneseq
        %v188 = vshrl.u32 %v187, 7
        %v189 = vsub.s32 %v186, %v188
        %v190 = vrot.slane %v175, %v189
        %v192 = vunpack.c.l.s4 1983009808
        %v193 = vunpack.c.0.s8 %v192
        %v194 = vlaneseq
        %v195 = vshrl.u32 %v194, 7
        %v196 = vsub.s32 %v193, %v195
        %v197 = vrot.slane %v183, %v196
        %v198 = vcombine.high %v179, 0.0
        %v200 = vunpack.c.l.s4 1983009808
        %v201 = vunpack.c.0.s8 %v200
        %v202 = vlaneseq
        %v203 = vshrl.u32 %v202, 7
        %v204 = vsub.s32 %v201, %v203
        %v205 = vrot.slane %v179, %v204
        %v207 = vunpack.c.l.s4 1983009808
        %v208 = vunpack.c.0.s8 %v207
        %v209 = vlaneseq
        %v210 = vshrl.u32 %v209, 7
        %v211 = vsub.s32 %v208, %v210
        %v212 = vrot.slane %v198, %v211
        %v213 = vcombine.low %v190, %v205
        %v214 = vcombine.high %v190, %v205
        %v216 = vunpack.c.l.s4 1934713408
        %v217 = vunpack.c.0.s8 %v216
        %v218 = vlaneseq
        %v219 = vshrl.u32 %v218, 7
        %v220 = vsub.s32 %v217, %v219
        %v221 = vrot.slane %v213, %v220
        %v223 = vunpack.c.l.s4 1934713408
        %v224 = vunpack.c.0.s8 %v223
        %v225 = vlaneseq
        %v226 = vshrl.u32 %v225, 7
        %v227 = vsub.s32 %v224, %v226
        %v228 = vrot.slane %v214, %v227
        %v229 = vcombine.low %v197, %v212
        %v230 = vcombine.high %v197, %v212
        %v232 = vunpack.c.l.s4 1934713408
        %v233 = vunpack.c.0.s8 %v232
        %v234 = vlaneseq
        %v235 = vshrl.u32 %v234, 7
        %v236 = vsub.s32 %v233, %v235
        %v237 = vrot.slane %v229, %v236
        %v239 = vunpack.c.l.s4 1934713408
        %v240 = vunpack.c.0.s8 %v239
        %v241 = vlaneseq
        %v242 = vshrl.u32 %v241, 7
        %v243 = vsub.s32 %v240, %v242
        %v244 = vrot.slane %v230, %v243
        %v245 = vcombine.high %v221, 0.0
        %v246 = vcombine.high %v228, 0.0
        %v247 = vcombine.high %v237, 0.0
        %v248 = vcombine.high %v244, 0.0
        %v249 = vcombine.high %v176, 0.0
        %v251 = vunpack.c.l.s4 1983009808
        %v252 = vunpack.c.0.s8 %v251
        %v253 = vlaneseq
        %v254 = vshrl.u32 %v253, 7
        %v255 = vsub.s32 %v252, %v254
        %v256 = vrot.slane %v176, %v255
        %v258 = vunpack.c.l.s4 1983009808
        %v259 = vunpack.c.0.s8 %v258
        %v260 = vlaneseq
        %v261 = vshrl.u32 %v260, 7
        %v262 = vsub.s32 %v259, %v261
        %v263 = vrot.slane %v249, %v262
        %v264 = vcombine.high %v180, 0.0
        %v266 = vunpack.c.l.s4 1983009808
        %v267 = vunpack.c.0.s8 %v266
        %v268 = vlaneseq
        %v269 = vshrl.u32 %v268, 7
        %v270 = vsub.s32 %v267, %v269
        %v271 = vrot.slane %v180, %v270
        %v273 = vunpack.c.l.s4 1983009808
        %v274 = vunpack.c.0.s8 %v273
        %v275 = vlaneseq
        %v276 = vshrl.u32 %v275, 7
        %v277 = vsub.s32 %v274, %v276
        %v278 = vrot.slane %v264, %v277
        %v279 = vcombine.low %v256, %v271
        %v280 = vcombine.high %v256, %v271
        %v282 = vunpack.c.l.s4 1934713408
        %v283 = vunpack.c.0.s8 %v282
        %v284 = vlaneseq
        %v285 = vshrl.u32 %v284, 7
        %v286 = vsub.s32 %v283, %v285
        %v287 = vrot.slane %v279, %v286
        %v289 = vunpack.c.l.s4 1934713408
        %v290 = vunpack.c.0.s8 %v289
        %v291 = vlaneseq
        %v292 = vshrl.u32 %v291, 7
        %v293 = vsub.s32 %v290, %v292
        %v294 = vrot.slane %v280, %v293
        %v295 = vcombine.low %v263, %v278
        %v296 = vcombine.high %v263, %v278
        %v298 = vunpack.c.l.s4 1934713408
        %v299 = vunpack.c.0.s8 %v298
        %v300 = vlaneseq
        %v301 = vshrl.u32 %v300, 7
        %v302 = vsub.s32 %v299, %v301
        %v303 = vrot.slane %v295, %v302
        %v305 = vunpack.c.l.s4 1934713408
        %v306 = vunpack.c.0.s8 %v305
        %v307 = vlaneseq
        %v308 = vshrl.u32 %v307, 7
        %v309 = vsub.s32 %v306, %v308
        %v310 = vrot.slane %v296, %v309
        %v311 = vcombine.high %v287, 0.0
        %v312 = vcombine.high %v294, 0.0
        %v313 = vcombine.high %v303, 0.0
        %v314 = vcombine.high %v310, 0.0
        %v315 = vcombine.high %v177, 0.0
        %v317 = vunpack.c.l.s4 1983009808
        %v318 = vunpack.c.0.s8 %v317
        %v319 = vlaneseq
        %v320 = vshrl.u32 %v319, 7
        %v321 = vsub.s32 %v318, %v320
        %v322 = vrot.slane %v177, %v321
        %v324 = vunpack.c.l.s4 1983009808
        %v325 = vunpack.c.0.s8 %v324
        %v326 = vlaneseq
        %v327 = vshrl.u32 %v326, 7
        %v328 = vsub.s32 %v325, %v327
        %v329 = vrot.slane %v315, %v328
        %v330 = vcombine.high %v181, 0.0
        %v332 = vunpack.c.l.s4 1983009808
        %v333 = vunpack.c.0.s8 %v332
        %v334 = vlaneseq
        %v335 = vshrl.u32 %v334, 7
        %v336 = vsub.s32 %v333, %v335
        %v337 = vrot.slane %v181, %v336
        %v339 = vunpack.c.l.s4 1983009808
        %v340 = vunpack.c.0.s8 %v339
        %v341 = vlaneseq
        %v342 = vshrl.u32 %v341, 7
        %v343 = vsub.s32 %v340, %v342
        %v344 = vrot.slane %v330, %v343
        %v345 = vcombine.low %v322, %v337
        %v346 = vcombine.high %v322, %v337
        %v348 = vunpack.c.l.s4 1934713408
        %v349 = vunpack.c.0.s8 %v348
        %v350 = vlaneseq
        %v351 = vshrl.u32 %v350, 7
        %v352 = vsub.s32 %v349, %v351
        %v353 = vrot.slane %v345, %v352
        %v355 = vunpack.c.l.s4 1934713408
        %v356 = vunpack.c.0.s8 %v355
        %v357 = vlaneseq
        %v358 = vshrl.u32 %v357, 7
        %v359 = vsub.s32 %v356, %v358
        %v360 = vrot.slane %v346, %v359
        %v361 = vcombine.low %v329, %v344
        %v362 = vcombine.high %v329, %v344
        %v364 = vunpack.c.l.s4 1934713408
        %v365 = vunpack.c.0.s8 %v364
        %v366 = vlaneseq
        %v367 = vshrl.u32 %v366, 7
        %v368 = vsub.s32 %v365, %v367
        %v369 = vrot.slane %v361, %v368
        %v371 = vunpack.c.l.s4 1934713408
        %v372 = vunpack.c.0.s8 %v371
        %v373 = vlaneseq
        %v374 = vshrl.u32 %v373, 7
        %v375 = vsub.s32 %v372, %v374
        %v376 = vrot.slane %v362, %v375
        %v377 = vcombine.high %v353, 0.0
        %v378 = vcombine.high %v360, 0.0
        %v379 = vcombine.high %v369, 0.0
        %v380 = vcombine.high %v376, 0.0
        %v381 = vcombine.high %v178, 0.0
        %v383 = vunpack.c.l.s4 1983009808
        %v384 = vunpack.c.0.s8 %v383
        %v385 = vlaneseq
        %v386 = vshrl.u32 %v385, 7
        %v387 = vsub.s32 %v384, %v386
        %v388 = vrot.slane %v178, %v387
        %v390 = vunpack.c.l.s4 1983009808
        %v391 = vunpack.c.0.s8 %v390
        %v392 = vlaneseq
        %v393 = vshrl.u32 %v392, 7
        %v394 = vsub.s32 %v391, %v393
        %v395 = vrot.slane %v381, %v394
        %v396 = vcombine.high %v182, 0.0
        %v398 = vunpack.c.l.s4 1983009808
        %v399 = vunpack.c.0.s8 %v398
        %v400 = vlaneseq
        %v401 = vshrl.u32 %v400, 7
        %v402 = vsub.s32 %v399, %v401
        %v403 = vrot.slane %v182, %v402
        %v405 = vunpack.c.l.s4 1983009808
        %v406 = vunpack.c.0.s8 %v405
        %v407 = vlaneseq
        %v408 = vshrl.u32 %v407, 7
        %v409 = vsub.s32 %v406, %v408
        %v410 = vrot.slane %v396, %v409
        %v411 = vcombine.low %v388, %v403
        %v412 = vcombine.high %v388, %v403
        %v414 = vunpack.c.l.s4 1934713408
        %v415 = vunpack.c.0.s8 %v414
        %v416 = vlaneseq
        %v417 = vshrl.u32 %v416, 7
        %v418 = vsub.s32 %v415, %v417
        %v419 = vrot.slane %v411, %v418
        %v421 = vunpack.c.l.s4 1934713408
        %v422 = vunpack.c.0.s8 %v421
        %v423 = vlaneseq
        %v424 = vshrl.u32 %v423, 7
        %v425 = vsub.s32 %v422, %v424
        %v426 = vrot.slane %v412, %v425
        %v427 = vcombine.low %v395, %v410
        %v428 = vcombine.high %v395, %v410
        %v430 = vunpack.c.l.s4 1934713408
        %v431 = vunpack.c.0.s8 %v430
        %v432 = vlaneseq
        %v433 = vshrl.u32 %v432, 7
        %v434 = vsub.s32 %v431, %v433
        %v435 = vrot.slane %v427, %v434
        %v437 = vunpack.c.l.s4 1934713408
        %v438 = vunpack.c.0.s8 %v437
        %v439 = vlaneseq
        %v440 = vshrl.u32 %v439, 7
        %v441 = vsub.s32 %v438, %v440
        %v442 = vrot.slane %v428, %v441
        %v443 = vcombine.high %v419, 0.0
        %v444 = vcombine.high %v426, 0.0
        %v445 = vcombine.high %v435, 0.0
        %v446 = vcombine.high %v442, 0.0
        %v447 = vcombine.low %v221, %v228
        %v449 = vunpack.c.l.s4 1983009808
        %v450 = vunpack.c.0.s8 %v449
        %v451 = vlaneseq
        %v452 = vshrl.u32 %v451, 7
        %v453 = vsub.s32 %v450, %v452
        %v454 = vrot.slane %v447, %v453
        %v455 = vcombine.low %v245, %v246
        %v457 = vunpack.c.l.s4 1983009808
        %v458 = vunpack.c.0.s8 %v457
        %v459 = vlaneseq
        %v460 = vshrl.u32 %v459, 7
        %v461 = vsub.s32 %v458, %v460
        %v462 = vrot.slane %v455, %v461
        %v463 = vcombine.low %v237, %v244
        %v465 = vunpack.c.l.s4 1983009808
        %v466 = vunpack.c.0.s8 %v465
        %v467 = vlaneseq
        %v468 = vshrl.u32 %v467, 7
        %v469 = vsub.s32 %v466, %v468
        %v470 = vrot.slane %v463, %v469
        %v471 = vcombine.low %v247, %v248
        %v473 = vunpack.c.l.s4 1983009808
        %v474 = vunpack.c.0.s8 %v473
        %v475 = vlaneseq
        %v476 = vshrl.u32 %v475, 7
        %v477 = vsub.s32 %v474, %v476
        %v478 = vrot.slane %v471, %v477
        %v479 = vcombine.low %v454, %v462
        %v481 = vunpack.c.l.s4 1934713408
        %v482 = vunpack.c.0.s8 %v481
        %v483 = vlaneseq
        %v484 = vshrl.u32 %v483, 7
        %v485 = vsub.s32 %v482, %v484
        %v486 = vrot.slane %v479, %v485
        %v487 = vcombine.low %v470, %v478
        %v489 = vunpack.c.l.s4 1934713408
        %v490 = vunpack.c.0.s8 %v489
        %v491 = vlaneseq
        %v492 = vshrl.u32 %v491, 7
        %v493 = vsub.s32 %v490, %v492
        %v494 = vrot.slane %v487, %v493
        %v495 = vcombine.low %v486, %v494
        %v496 = vcombine.high %v486, %v494
        %v497 = vcombine.low %v287, %v294
        %v499 = vunpack.c.l.s4 1983009808
        %v500 = vunpack.c.0.s8 %v499
        %v501 = vlaneseq
        %v502 = vshrl.u32 %v501, 7
        %v503 = vsub.s32 %v500, %v502
        %v504 = vrot.slane %v497, %v503
        %v505 = vcombine.low %v311, %v312
        %v507 = vunpack.c.l.s4 1983009808
        %v508 = vunpack.c.0.s8 %v507
        %v509 = vlaneseq
        %v510 = vshrl.u32 %v509, 7
        %v511 = vsub.s32 %v508, %v510
        %v512 = vrot.slane %v505, %v511
        %v513 = vcombine.low %v303, %v310
        %v515 = vunpack.c.l.s4 1983009808
        %v516 = vunpack.c.0.s8 %v515
        %v517 = vlaneseq
        %v518 = vshrl.u32 %v517, 7
        %v519 = vsub.s32 %v516, %v518
        %v520 = vrot.slane %v513, %v519
        %v521 = vcombine.low %v313, %v314
        %v523 = vunpack.c.l.s4 1983009808
        %v524 = vunpack.c.0.s8 %v523
        %v525 = vlaneseq
        %v526 = vshrl.u32 %v525, 7
        %v527 = vsub.s32 %v524, %v526
        %v528 = vrot.slane %v521, %v527
        %v529 = vcombine.low %v504, %v512
        %v531 = vunpack.c.l.s4 1934713408
        %v532 = vunpack.c.0.s8 %v531
        %v533 = vlaneseq
        %v534 = vshrl.u32 %v533, 7
        %v535 = vsub.s32 %v532, %v534
        %v536 = vrot.slane %v529, %v535
        %v537 = vcombine.low %v520, %v528
        %v539 = vunpack.c.l.s4 1934713408
        %v540 = vunpack.c.0.s8 %v539
        %v541 = vlaneseq
        %v542 = vshrl.u32 %v541, 7
        %v543 = vsub.s32 %v540, %v542
        %v544 = vrot.slane %v537, %v543
        %v545 = vcombine.low %v536, %v544
        %v546 = vcombine.high %v536, %v544
        %v547 = vcombine.low %v353, %v360
        %v549 = vunpack.c.l.s4 1983009808
        %v550 = vunpack.c.0.s8 %v549
        %v551 = vlaneseq
        %v552 = vshrl.u32 %v551, 7
        %v553 = vsub.s32 %v550, %v552
        %v554 = vrot.slane %v547, %v553
        %v555 = vcombine.low %v377, %v378
        %v557 = vunpack.c.l.s4 1983009808
        %v558 = vunpack.c.0.s8 %v557
        %v559 = vlaneseq
        %v560 = vshrl.u32 %v559, 7
        %v561 = vsub.s32 %v558, %v560
        %v562 = vrot.slane %v555, %v561
        %v563 = vcombine.low %v369, %v376
        %v565 = vunpack.c.l.s4 1983009808
        %v566 = vunpack.c.0.s8 %v565
        %v567 = vlaneseq
        %v568 = vshrl.u32 %v567, 7
        %v569 = vsub.s32 %v566, %v568
        %v570 = vrot.slane %v563, %v569
        %v571 = vcombine.low %v379, %v380
        %v573 = vunpack.c.l.s4 1983009808
        %v574 = vunpack.c.0.s8 %v573
        %v575 = vlaneseq
        %v576 = vshrl.u32 %v575, 7
        %v577 = vsub.s32 %v574, %v576
        %v578 = vrot.slane %v571, %v577
        %v579 = vcombine.low %v554, %v562
        %v581 = vunpack.c.l.s4 1934713408
        %v582 = vunpack.c.0.s8 %v581
        %v583 = vlaneseq
        %v584 = vshrl.u32 %v583, 7
        %v585 = vsub.s32 %v582, %v584
        %v586 = vrot.slane %v579, %v585
        %v587 = vcombine.low %v570, %v578
        %v589 = vunpack.c.l.s4 1934713408
        %v590 = vunpack.c.0.s8 %v589
        %v591 = vlaneseq
        %v592 = vshrl.u32 %v591, 7
        %v593 = vsub.s32 %v590, %v592
        %v594 = vrot.slane %v587, %v593
        %v595 = vcombine.low %v586, %v594
        %v596 = vcombine.high %v586, %v594
        %v597 = vcombine.low %v419, %v426
        %v599 = vunpack.c.l.s4 1983009808
        %v600 = vunpack.c.0.s8 %v599
        %v601 = vlaneseq
        %v602 = vshrl.u32 %v601, 7
        %v603 = vsub.s32 %v600, %v602
        %v604 = vrot.slane %v597, %v603
        %v605 = vcombine.low %v443, %v444
        %v607 = vunpack.c.l.s4 1983009808
        %v608 = vunpack.c.0.s8 %v607
        %v609 = vlaneseq
        %v610 = vshrl.u32 %v609, 7
        %v611 = vsub.s32 %v608, %v610
        %v612 = vrot.slane %v605, %v611
        %v613 = vcombine.low %v435, %v442
        %v615 = vunpack.c.l.s4 1983009808
        %v616 = vunpack.c.0.s8 %v615
        %v617 = vlaneseq
        %v618 = vshrl.u32 %v617, 7
        %v619 = vsub.s32 %v616, %v618
        %v620 = vrot.slane %v613, %v619
        %v621 = vcombine.low %v445, %v446
        %v623 = vunpack.c.l.s4 1983009808
        %v624 = vunpack.c.0.s8 %v623
        %v625 = vlaneseq
        %v626 = vshrl.u32 %v625, 7
        %v627 = vsub.s32 %v624, %v626
        %v628 = vrot.slane %v621, %v627
        %v629 = vcombine.low %v604, %v612
        %v631 = vunpack.c.l.s4 1934713408
        %v632 = vunpack.c.0.s8 %v631
        %v633 = vlaneseq
        %v634 = vshrl.u32 %v633, 7
        %v635 = vsub.s32 %v632, %v634
        %v636 = vrot.slane %v629, %v635
        %v637 = vcombine.low %v620, %v628
        %v639 = vunpack.c.l.s4 1934713408
        %v640 = vunpack.c.0.s8 %v639
        %v641 = vlaneseq
        %v642 = vshrl.u32 %v641, 7
        %v643 = vsub.s32 %v640, %v642
        %v644 = vrot.slane %v637, %v643
        %v645 = vcombine.low %v636, %v644
        %v646 = vcombine.high %v636, %v644
        %651 = vrot.lane.b32.xlu0 %v496, 12
        %v652 = vpop.permute.xlu0 %651
        %653 = vrot.lane.b32.xlu0 %v546, 12
        %v654 = vpop.permute.xlu0 %653
        %655 = vrot.lane.b32.xlu0 %v596, 12
        %v656 = vpop.permute.xlu0 %655
        %657 = vrot.lane.b32.xlu0 %v646, 12
        %v658 = vpop.permute.xlu0 %657
        %vm663 = vcmask 97280
        %v664 = vsel %vm663, %v495, %v652
        %v665 = vsel %vm663, %v545, %v654
        %v666 = vsel %vm663, %v595, %v656
        %v667 = vsel %vm663, %v645, %v658
        %v668 = vld [vmem:[%s1] sm:$0xff]
        %v669 = vld [vmem:[%s1 + $0x8] sm:$0xff]
        %v670 = vld [vmem:[%s1 + $0x10] sm:$0xff]
        %v671 = vld [vmem:[%s1 + $0x18] sm:$0xff]
        %v672 = vld [vmem:[%s1 + $0x20] sm:$0xff]
        %v673 = vld [vmem:[%s1 + $0x28] sm:$0xff]
        %v674 = vld [vmem:[%s1 + $0x30] sm:$0xff]
        %v675 = vld [vmem:[%s1 + $0x38] sm:$0xff]
        %v676 = vld [vmem:[%s2] sm:$0xff]
        %v677 = vld [vmem:[%s2 + $0x8] sm:$0xff]
        %v678 = vld [vmem:[%s2 + $0x10] sm:$0xff]
        %v679 = vld [vmem:[%s2 + $0x18] sm:$0xff]
        %v680 = vld [vmem:[%s2 + $0x20] sm:$0xff]
        %v681 = vld [vmem:[%s2 + $0x28] sm:$0xff]
        %v682 = vld [vmem:[%s2 + $0x30] sm:$0xff]
        %v683 = vld [vmem:[%s2 + $0x38] sm:$0xff]
        %685 = vset.pattern.permute.xlu0 0
        %686 = vperm.xlu0 %685, %v676
        %v687 = vpop.permute.xlu0 %686
        %690 = vset.pattern.permute.xlu0 0
        %691 = vperm.xlu0 %690, %v677
        %v692 = vpop.permute.xlu0 %691
        %695 = vset.pattern.permute.xlu0 0
        %696 = vperm.xlu0 %695, %v678
        %v697 = vpop.permute.xlu0 %696
        %700 = vset.pattern.permute.xlu0 0
        %701 = vperm.xlu0 %700, %v679
        %v702 = vpop.permute.xlu0 %701
        %705 = vset.pattern.permute.xlu0 0
        %706 = vperm.xlu0 %705, %v680
        %v707 = vpop.permute.xlu0 %706
        %710 = vset.pattern.permute.xlu0 0
        %711 = vperm.xlu0 %710, %v681
        %v712 = vpop.permute.xlu0 %711
        %715 = vset.pattern.permute.xlu0 0
        %716 = vperm.xlu0 %715, %v682
        %v717 = vpop.permute.xlu0 %716
        %720 = vset.pattern.permute.xlu0 0
        %721 = vperm.xlu0 %720, %v683
        %v722 = vpop.permute.xlu0 %721
        %vm724 = vcmask 261120
        %v726 = vsel %vm724, %v668, 0
        %v729 = vsel %vm724, %v669, 0
        %v732 = vsel %vm724, %v670, 0
        %v735 = vsel %vm724, %v671, 0
        %v738 = vsel %vm724, %v672, 0
        %v741 = vsel %vm724, %v673, 0
        %v744 = vsel %vm724, %v674, 0
        %v747 = vsel %vm724, %v675, 0
        %749 = vmatprep.subr.mxu0 0.0
        %750 = vmatpush1.msra.mxu0 0.0
        %751 = vmatprep.subr.mxu0 0.0
        %752 = vmatpush1.msra.mxu0 0.0
        %753 = vmatprep.subr.mxu0 0.0
        %754 = vmatpush1.msra.mxu0 0.0
        %755 = vmatprep.subr.mxu0 0.0
        %756 = vmatpush1.msra.mxu0 0.0
        %757 = vmatprep.subr.mxu0 0.0
        %758 = vmatpush1.msra.mxu0 0.0
        %759 = vmatprep.subr.mxu0 0.0
        %760 = vmatpush1.msra.mxu0 0.0
        %761 = vmatprep.subr.mxu0 0.0
        %762 = vmatpush1.msra.mxu0 0.0
        %763 = vmatprep.subr.mxu0 0.0
        %764 = vmatpush1.msra.mxu0 0.0
        %765 = vmatprep.subr.mxu0 0.0
        %766 = vmatpush1.msra.mxu0 0.0
        %767 = vmatprep.subr.mxu0 0.0
        %768 = vmatpush1.msra.mxu0 0.0
        %769 = vmatprep.subr.mxu0 0.0
        %770 = vmatpush1.msra.mxu0 0.0
        %771 = vmatprep.subr.mxu0 0.0
        %772 = vmatpush1.msra.mxu0 0.0
        %773 = vmatprep.subr.mxu0 0.0
        %774 = vmatpush1.msra.mxu0 %v667
        %775 = vmatprep.subr.mxu0 0.0
        %776 = vmatpush1.msra.mxu0 %v666
        %777 = vmatprep.subr.mxu0 0.0
        %778 = vmatpush1.msra.mxu0 %v665
        %779 = vmatprep.subr.mxu0 0.0
        %780 = vmatpush1.msra.mxu0 %v664
        %781 = vmatprep.subr.mxu0 0.0
        %782 = vmatpush2.msra.mxu0 0.0
        %783 = vmatprep.subr.mxu0 0.0
        %784 = vmatpush2.msra.mxu0 0.0
        %785 = vmatprep.subr.mxu0 0.0
        %786 = vmatpush2.msra.mxu0 0.0
        %787 = vmatprep.subr.mxu0 0.0
        %788 = vmatpush2.msra.mxu0 0.0
        %789 = vmatprep.subr.mxu0 0.0
        %790 = vmatpush2.msra.mxu0 0.0
        %791 = vmatprep.subr.mxu0 0.0
        %792 = vmatpush2.msra.mxu0 0.0
        %793 = vmatprep.subr.mxu0 0.0
        %794 = vmatpush2.msra.mxu0 0.0
        %795 = vmatprep.subr.mxu0 0.0
        %796 = vmatpush2.msra.mxu0 0.0
        %797 = vmatprep.subr.mxu0 0.0
        %798 = vmatpush2.msra.mxu0 0.0
        %799 = vmatprep.subr.mxu0 0.0
        %800 = vmatpush2.msra.mxu0 0.0
        %801 = vmatprep.subr.mxu0 0.0
        %802 = vmatpush2.msra.mxu0 0.0
        %803 = vmatprep.subr.mxu0 0.0
        %804 = vmatpush2.msra.mxu0 0.0
        %805 = vmatprep.subr.mxu0 0.0
        %806 = vmatpush2.msra.mxu0 0.0
        %807 = vmatprep.subr.mxu0 0.0
        %808 = vmatpush2.msra.mxu0 0.0
        %809 = vmatprep.subr.mxu0 0.0
        %810 = vmatpush2.msra.mxu0 0.0
        %811 = vmatprep.subr.mxu0 0.0
        %812 = vmatpush2.msra.mxu0 0.0
        %813 = vmatprep.mubr.f32.mxu0 0.0
        %814 = vmatmul.mubr.f32.gmra.mxu0 %v726
        %v815 = vpop.f32.mrf.mxu0
        %v816 = vadd.f32 %v687, %v815
        %v817 = vpop.f32.mrf.mxu0
        %818 = vmatprep.mubr.f32.mxu0 0.0
        %819 = vmatmul.mubr.f32.gmra.mxu0 %v729
        %v820 = vpop.f32.mrf.mxu0
        %v821 = vadd.f32 %v692, %v820
        %v822 = vpop.f32.mrf.mxu0
        %823 = vmatprep.mubr.f32.mxu0 0.0
        %824 = vmatmul.mubr.f32.gmra.mxu0 %v732
        %v825 = vpop.f32.mrf.mxu0
        %v826 = vadd.f32 %v697, %v825
        %v827 = vpop.f32.mrf.mxu0
        %828 = vmatprep.mubr.f32.mxu0 0.0
        %829 = vmatmul.mubr.f32.gmra.mxu0 %v735
        %v830 = vpop.f32.mrf.mxu0
        %v831 = vadd.f32 %v702, %v830
        %v832 = vpop.f32.mrf.mxu0
        %833 = vmatprep.mubr.f32.mxu0 0.0
        %834 = vmatmul.mubr.f32.gmra.mxu0 %v738
        %v835 = vpop.f32.mrf.mxu0
        %v836 = vadd.f32 %v707, %v835
        %v837 = vpop.f32.mrf.mxu0
        %838 = vmatprep.mubr.f32.mxu0 0.0
        %839 = vmatmul.mubr.f32.gmra.mxu0 %v741
        %v840 = vpop.f32.mrf.mxu0
        %v841 = vadd.f32 %v712, %v840
        %v842 = vpop.f32.mrf.mxu0
        %843 = vmatprep.mubr.f32.mxu0 0.0
        %844 = vmatmul.mubr.f32.gmra.mxu0 %v744
        %v845 = vpop.f32.mrf.mxu0
        %v846 = vadd.f32 %v717, %v845
        %v847 = vpop.f32.mrf.mxu0
        %848 = vmatprep.mubr.f32.mxu0 0.0
        %849 = vmatmul.mubr.f32.gmra.mxu0 %v747
        %v850 = vpop.f32.mrf.mxu0
        %v851 = vadd.f32 %v722, %v850
        %v852 = vpop.f32.mrf.mxu0
        %853 = vdwg.mxu0
        %862 = vrot.lane.b32.xlu0 %v816, 116
        %v863 = vpop.permute.xlu0 %862
        %864 = vrot.lane.b32.xlu0 %v821, 116
        %v865 = vpop.permute.xlu0 %864
        %866 = vrot.lane.b32.xlu0 %v826, 116
        %v867 = vpop.permute.xlu0 %866
        %868 = vrot.lane.b32.xlu0 %v831, 116
        %v869 = vpop.permute.xlu0 %868
        %870 = vrot.lane.b32.xlu0 %v836, 116
        %v871 = vpop.permute.xlu0 %870
        %872 = vrot.lane.b32.xlu0 %v841, 116
        %v873 = vpop.permute.xlu0 %872
        %874 = vrot.lane.b32.xlu0 %v846, 116
        %v875 = vpop.permute.xlu0 %874
        %876 = vrot.lane.b32.xlu0 %v851, 116
        %v877 = vpop.permute.xlu0 %876
        %v886 = vcombine.high %v816, 0.0
        %v888 = vunpack.c.l.s4 1983009808
        %v889 = vunpack.c.0.s8 %v888
        %v890 = vlaneseq
        %v891 = vshrl.u32 %v890, 7
        %v892 = vsub.s32 %v889, %v891
        %v893 = vrot.slane %v816, %v892
        %v895 = vunpack.c.l.s4 1983009808
        %v896 = vunpack.c.0.s8 %v895
        %v897 = vlaneseq
        %v898 = vshrl.u32 %v897, 7
        %v899 = vsub.s32 %v896, %v898
        %v900 = vrot.slane %v886, %v899
        %v901 = vcombine.high %v863, 0.0
        %v903 = vunpack.c.l.s4 1983009808
        %v904 = vunpack.c.0.s8 %v903
        %v905 = vlaneseq
        %v906 = vshrl.u32 %v905, 7
        %v907 = vsub.s32 %v904, %v906
        %v908 = vrot.slane %v863, %v907
        %v910 = vunpack.c.l.s4 1983009808
        %v911 = vunpack.c.0.s8 %v910
        %v912 = vlaneseq
        %v913 = vshrl.u32 %v912, 7
        %v914 = vsub.s32 %v911, %v913
        %v915 = vrot.slane %v901, %v914
        %v916 = vcombine.low %v893, %v908
        %v917 = vcombine.high %v893, %v908
        %v919 = vunpack.c.l.s4 1934713408
        %v920 = vunpack.c.0.s8 %v919
        %v921 = vlaneseq
        %v922 = vshrl.u32 %v921, 7
        %v923 = vsub.s32 %v920, %v922
        %v924 = vrot.slane %v916, %v923
        %v926 = vunpack.c.l.s4 1934713408
        %v927 = vunpack.c.0.s8 %v926
        %v928 = vlaneseq
        %v929 = vshrl.u32 %v928, 7
        %v930 = vsub.s32 %v927, %v929
        %v931 = vrot.slane %v917, %v930
        %v932 = vcombine.low %v900, %v915
        %v933 = vcombine.high %v900, %v915
        %v935 = vunpack.c.l.s4 1934713408
        %v936 = vunpack.c.0.s8 %v935
        %v937 = vlaneseq
        %v938 = vshrl.u32 %v937, 7
        %v939 = vsub.s32 %v936, %v938
        %v940 = vrot.slane %v932, %v939
        %v942 = vunpack.c.l.s4 1934713408
        %v943 = vunpack.c.0.s8 %v942
        %v944 = vlaneseq
        %v945 = vshrl.u32 %v944, 7
        %v946 = vsub.s32 %v943, %v945
        %v947 = vrot.slane %v933, %v946
        %v948 = vcombine.high %v924, 0.0
        %v949 = vcombine.high %v931, 0.0
        %v950 = vcombine.high %v940, 0.0
        %v951 = vcombine.high %v947, 0.0
        %v952 = vcombine.high %v821, 0.0
        %v954 = vunpack.c.l.s4 1983009808
        %v955 = vunpack.c.0.s8 %v954
        %v956 = vlaneseq
        %v957 = vshrl.u32 %v956, 7
        %v958 = vsub.s32 %v955, %v957
        %v959 = vrot.slane %v821, %v958
        %v961 = vunpack.c.l.s4 1983009808
        %v962 = vunpack.c.0.s8 %v961
        %v963 = vlaneseq
        %v964 = vshrl.u32 %v963, 7
        %v965 = vsub.s32 %v962, %v964
        %v966 = vrot.slane %v952, %v965
        %v967 = vcombine.high %v865, 0.0
        %v969 = vunpack.c.l.s4 1983009808
        %v970 = vunpack.c.0.s8 %v969
        %v971 = vlaneseq
        %v972 = vshrl.u32 %v971, 7
        %v973 = vsub.s32 %v970, %v972
        %v974 = vrot.slane %v865, %v973
        %v976 = vunpack.c.l.s4 1983009808
        %v977 = vunpack.c.0.s8 %v976
        %v978 = vlaneseq
        %v979 = vshrl.u32 %v978, 7
        %v980 = vsub.s32 %v977, %v979
        %v981 = vrot.slane %v967, %v980
        %v982 = vcombine.low %v959, %v974
        %v983 = vcombine.high %v959, %v974
        %v985 = vunpack.c.l.s4 1934713408
        %v986 = vunpack.c.0.s8 %v985
        %v987 = vlaneseq
        %v988 = vshrl.u32 %v987, 7
        %v989 = vsub.s32 %v986, %v988
        %v990 = vrot.slane %v982, %v989
        %v992 = vunpack.c.l.s4 1934713408
        %v993 = vunpack.c.0.s8 %v992
        %v994 = vlaneseq
        %v995 = vshrl.u32 %v994, 7
        %v996 = vsub.s32 %v993, %v995
        %v997 = vrot.slane %v983, %v996
        %v998 = vcombine.low %v966, %v981
        %v999 = vcombine.high %v966, %v981
        %v1001 = vunpack.c.l.s4 1934713408
        %v1002 = vunpack.c.0.s8 %v1001
        %v1003 = vlaneseq
        %v1004 = vshrl.u32 %v1003, 7
        %v1005 = vsub.s32 %v1002, %v1004
        %v1006 = vrot.slane %v998, %v1005
        %v1008 = vunpack.c.l.s4 1934713408
        %v1009 = vunpack.c.0.s8 %v1008
        %v1010 = vlaneseq
        %v1011 = vshrl.u32 %v1010, 7
        %v1012 = vsub.s32 %v1009, %v1011
        %v1013 = vrot.slane %v999, %v1012
        %v1014 = vcombine.high %v990, 0.0
        %v1015 = vcombine.high %v997, 0.0
        %v1016 = vcombine.high %v1006, 0.0
        %v1017 = vcombine.high %v1013, 0.0
        %v1018 = vcombine.high %v826, 0.0
        %v1020 = vunpack.c.l.s4 1983009808
        %v1021 = vunpack.c.0.s8 %v1020
        %v1022 = vlaneseq
        %v1023 = vshrl.u32 %v1022, 7
        %v1024 = vsub.s32 %v1021, %v1023
        %v1025 = vrot.slane %v826, %v1024
        %v1027 = vunpack.c.l.s4 1983009808
        %v1028 = vunpack.c.0.s8 %v1027
        %v1029 = vlaneseq
        %v1030 = vshrl.u32 %v1029, 7
        %v1031 = vsub.s32 %v1028, %v1030
        %v1032 = vrot.slane %v1018, %v1031
        %v1033 = vcombine.high %v867, 0.0
        %v1035 = vunpack.c.l.s4 1983009808
        %v1036 = vunpack.c.0.s8 %v1035
        %v1037 = vlaneseq
        %v1038 = vshrl.u32 %v1037, 7
        %v1039 = vsub.s32 %v1036, %v1038
        %v1040 = vrot.slane %v867, %v1039
        %v1042 = vunpack.c.l.s4 1983009808
        %v1043 = vunpack.c.0.s8 %v1042
        %v1044 = vlaneseq
        %v1045 = vshrl.u32 %v1044, 7
        %v1046 = vsub.s32 %v1043, %v1045
        %v1047 = vrot.slane %v1033, %v1046
        %v1048 = vcombine.low %v1025, %v1040
        %v1049 = vcombine.high %v1025, %v1040
        %v1051 = vunpack.c.l.s4 1934713408
        %v1052 = vunpack.c.0.s8 %v1051
        %v1053 = vlaneseq
        %v1054 = vshrl.u32 %v1053, 7
        %v1055 = vsub.s32 %v1052, %v1054
        %v1056 = vrot.slane %v1048, %v1055
        %v1058 = vunpack.c.l.s4 1934713408
        %v1059 = vunpack.c.0.s8 %v1058
        %v1060 = vlaneseq
        %v1061 = vshrl.u32 %v1060, 7
        %v1062 = vsub.s32 %v1059, %v1061
        %v1063 = vrot.slane %v1049, %v1062
        %v1064 = vcombine.low %v1032, %v1047
        %v1065 = vcombine.high %v1032, %v1047
        %v1067 = vunpack.c.l.s4 1934713408
        %v1068 = vunpack.c.0.s8 %v1067
        %v1069 = vlaneseq
        %v1070 = vshrl.u32 %v1069, 7
        %v1071 = vsub.s32 %v1068, %v1070
        %v1072 = vrot.slane %v1064, %v1071
        %v1074 = vunpack.c.l.s4 1934713408
        %v1075 = vunpack.c.0.s8 %v1074
        %v1076 = vlaneseq
        %v1077 = vshrl.u32 %v1076, 7
        %v1078 = vsub.s32 %v1075, %v1077
        %v1079 = vrot.slane %v1065, %v1078
        %v1080 = vcombine.high %v1056, 0.0
        %v1081 = vcombine.high %v1063, 0.0
        %v1082 = vcombine.high %v1072, 0.0
        %v1083 = vcombine.high %v1079, 0.0
        %v1084 = vcombine.high %v831, 0.0
        %v1086 = vunpack.c.l.s4 1983009808
        %v1087 = vunpack.c.0.s8 %v1086
        %v1088 = vlaneseq
        %v1089 = vshrl.u32 %v1088, 7
        %v1090 = vsub.s32 %v1087, %v1089
        %v1091 = vrot.slane %v831, %v1090
        %v1093 = vunpack.c.l.s4 1983009808
        %v1094 = vunpack.c.0.s8 %v1093
        %v1095 = vlaneseq
        %v1096 = vshrl.u32 %v1095, 7
        %v1097 = vsub.s32 %v1094, %v1096
        %v1098 = vrot.slane %v1084, %v1097
        %v1099 = vcombine.high %v869, 0.0
        %v1101 = vunpack.c.l.s4 1983009808
        %v1102 = vunpack.c.0.s8 %v1101
        %v1103 = vlaneseq
        %v1104 = vshrl.u32 %v1103, 7
        %v1105 = vsub.s32 %v1102, %v1104
        %v1106 = vrot.slane %v869, %v1105
        %v1108 = vunpack.c.l.s4 1983009808
        %v1109 = vunpack.c.0.s8 %v1108
        %v1110 = vlaneseq
        %v1111 = vshrl.u32 %v1110, 7
        %v1112 = vsub.s32 %v1109, %v1111
        %v1113 = vrot.slane %v1099, %v1112
        %v1114 = vcombine.low %v1091, %v1106
        %v1115 = vcombine.high %v1091, %v1106
        %v1117 = vunpack.c.l.s4 1934713408
        %v1118 = vunpack.c.0.s8 %v1117
        %v1119 = vlaneseq
        %v1120 = vshrl.u32 %v1119, 7
        %v1121 = vsub.s32 %v1118, %v1120
        %v1122 = vrot.slane %v1114, %v1121
        %v1124 = vunpack.c.l.s4 1934713408
        %v1125 = vunpack.c.0.s8 %v1124
        %v1126 = vlaneseq
        %v1127 = vshrl.u32 %v1126, 7
        %v1128 = vsub.s32 %v1125, %v1127
        %v1129 = vrot.slane %v1115, %v1128
        %v1130 = vcombine.low %v1098, %v1113
        %v1131 = vcombine.high %v1098, %v1113
        %v1133 = vunpack.c.l.s4 1934713408
        %v1134 = vunpack.c.0.s8 %v1133
        %v1135 = vlaneseq
        %v1136 = vshrl.u32 %v1135, 7
        %v1137 = vsub.s32 %v1134, %v1136
        %v1138 = vrot.slane %v1130, %v1137
        %v1140 = vunpack.c.l.s4 1934713408
        %v1141 = vunpack.c.0.s8 %v1140
        %v1142 = vlaneseq
        %v1143 = vshrl.u32 %v1142, 7
        %v1144 = vsub.s32 %v1141, %v1143
        %v1145 = vrot.slane %v1131, %v1144
        %v1146 = vcombine.high %v1122, 0.0
        %v1147 = vcombine.high %v1129, 0.0
        %v1148 = vcombine.high %v1138, 0.0
        %v1149 = vcombine.high %v1145, 0.0
        %v1150 = vcombine.high %v836, 0.0
        %v1152 = vunpack.c.l.s4 1983009808
        %v1153 = vunpack.c.0.s8 %v1152
        %v1154 = vlaneseq
        %v1155 = vshrl.u32 %v1154, 7
        %v1156 = vsub.s32 %v1153, %v1155
        %v1157 = vrot.slane %v836, %v1156
        %v1159 = vunpack.c.l.s4 1983009808
        %v1160 = vunpack.c.0.s8 %v1159
        %v1161 = vlaneseq
        %v1162 = vshrl.u32 %v1161, 7
        %v1163 = vsub.s32 %v1160, %v1162
        %v1164 = vrot.slane %v1150, %v1163
        %v1165 = vcombine.high %v871, 0.0
        %v1167 = vunpack.c.l.s4 1983009808
        %v1168 = vunpack.c.0.s8 %v1167
        %v1169 = vlaneseq
        %v1170 = vshrl.u32 %v1169, 7
        %v1171 = vsub.s32 %v1168, %v1170
        %v1172 = vrot.slane %v871, %v1171
        %v1174 = vunpack.c.l.s4 1983009808
        %v1175 = vunpack.c.0.s8 %v1174
        %v1176 = vlaneseq
        %v1177 = vshrl.u32 %v1176, 7
        %v1178 = vsub.s32 %v1175, %v1177
        %v1179 = vrot.slane %v1165, %v1178
        %v1180 = vcombine.low %v1157, %v1172
        %v1181 = vcombine.high %v1157, %v1172
        %v1183 = vunpack.c.l.s4 1934713408
        %v1184 = vunpack.c.0.s8 %v1183
        %v1185 = vlaneseq
        %v1186 = vshrl.u32 %v1185, 7
        %v1187 = vsub.s32 %v1184, %v1186
        %v1188 = vrot.slane %v1180, %v1187
        %v1190 = vunpack.c.l.s4 1934713408
        %v1191 = vunpack.c.0.s8 %v1190
        %v1192 = vlaneseq
        %v1193 = vshrl.u32 %v1192, 7
        %v1194 = vsub.s32 %v1191, %v1193
        %v1195 = vrot.slane %v1181, %v1194
        %v1196 = vcombine.low %v1164, %v1179
        %v1197 = vcombine.high %v1164, %v1179
        %v1199 = vunpack.c.l.s4 1934713408
        %v1200 = vunpack.c.0.s8 %v1199
        %v1201 = vlaneseq
        %v1202 = vshrl.u32 %v1201, 7
        %v1203 = vsub.s32 %v1200, %v1202
        %v1204 = vrot.slane %v1196, %v1203
        %v1206 = vunpack.c.l.s4 1934713408
        %v1207 = vunpack.c.0.s8 %v1206
        %v1208 = vlaneseq
        %v1209 = vshrl.u32 %v1208, 7
        %v1210 = vsub.s32 %v1207, %v1209
        %v1211 = vrot.slane %v1197, %v1210
        %v1212 = vcombine.high %v1188, 0.0
        %v1213 = vcombine.high %v1195, 0.0
        %v1214 = vcombine.high %v1204, 0.0
        %v1215 = vcombine.high %v1211, 0.0
        %v1216 = vcombine.high %v841, 0.0
        %v1218 = vunpack.c.l.s4 1983009808
        %v1219 = vunpack.c.0.s8 %v1218
        %v1220 = vlaneseq
        %v1221 = vshrl.u32 %v1220, 7
        %v1222 = vsub.s32 %v1219, %v1221
        %v1223 = vrot.slane %v841, %v1222
        %v1225 = vunpack.c.l.s4 1983009808
        %v1226 = vunpack.c.0.s8 %v1225
        %v1227 = vlaneseq
        %v1228 = vshrl.u32 %v1227, 7
        %v1229 = vsub.s32 %v1226, %v1228
        %v1230 = vrot.slane %v1216, %v1229
        %v1231 = vcombine.high %v873, 0.0
        %v1233 = vunpack.c.l.s4 1983009808
        %v1234 = vunpack.c.0.s8 %v1233
        %v1235 = vlaneseq
        %v1236 = vshrl.u32 %v1235, 7
        %v1237 = vsub.s32 %v1234, %v1236
        %v1238 = vrot.slane %v873, %v1237
        %v1240 = vunpack.c.l.s4 1983009808
        %v1241 = vunpack.c.0.s8 %v1240
        %v1242 = vlaneseq
        %v1243 = vshrl.u32 %v1242, 7
        %v1244 = vsub.s32 %v1241, %v1243
        %v1245 = vrot.slane %v1231, %v1244
        %v1246 = vcombine.low %v1223, %v1238
        %v1247 = vcombine.high %v1223, %v1238
        %v1249 = vunpack.c.l.s4 1934713408
        %v1250 = vunpack.c.0.s8 %v1249
        %v1251 = vlaneseq
        %v1252 = vshrl.u32 %v1251, 7
        %v1253 = vsub.s32 %v1250, %v1252
        %v1254 = vrot.slane %v1246, %v1253
        %v1256 = vunpack.c.l.s4 1934713408
        %v1257 = vunpack.c.0.s8 %v1256
        %v1258 = vlaneseq
        %v1259 = vshrl.u32 %v1258, 7
        %v1260 = vsub.s32 %v1257, %v1259
        %v1261 = vrot.slane %v1247, %v1260
        %v1262 = vcombine.low %v1230, %v1245
        %v1263 = vcombine.high %v1230, %v1245
        %v1265 = vunpack.c.l.s4 1934713408
        %v1266 = vunpack.c.0.s8 %v1265
        %v1267 = vlaneseq
        %v1268 = vshrl.u32 %v1267, 7
        %v1269 = vsub.s32 %v1266, %v1268
        %v1270 = vrot.slane %v1262, %v1269
        %v1272 = vunpack.c.l.s4 1934713408
        %v1273 = vunpack.c.0.s8 %v1272
        %v1274 = vlaneseq
        %v1275 = vshrl.u32 %v1274, 7
        %v1276 = vsub.s32 %v1273, %v1275
        %v1277 = vrot.slane %v1263, %v1276
        %v1278 = vcombine.high %v1254, 0.0
        %v1279 = vcombine.high %v1261, 0.0
        %v1280 = vcombine.high %v1270, 0.0
        %v1281 = vcombine.high %v1277, 0.0
        %v1282 = vcombine.high %v846, 0.0
        %v1284 = vunpack.c.l.s4 1983009808
        %v1285 = vunpack.c.0.s8 %v1284
        %v1286 = vlaneseq
        %v1287 = vshrl.u32 %v1286, 7
        %v1288 = vsub.s32 %v1285, %v1287
        %v1289 = vrot.slane %v846, %v1288
        %v1291 = vunpack.c.l.s4 1983009808
        %v1292 = vunpack.c.0.s8 %v1291
        %v1293 = vlaneseq
        %v1294 = vshrl.u32 %v1293, 7
        %v1295 = vsub.s32 %v1292, %v1294
        %v1296 = vrot.slane %v1282, %v1295
        %v1297 = vcombine.high %v875, 0.0
        %v1299 = vunpack.c.l.s4 1983009808
        %v1300 = vunpack.c.0.s8 %v1299
        %v1301 = vlaneseq
        %v1302 = vshrl.u32 %v1301, 7
        %v1303 = vsub.s32 %v1300, %v1302
        %v1304 = vrot.slane %v875, %v1303
        %v1306 = vunpack.c.l.s4 1983009808
        %v1307 = vunpack.c.0.s8 %v1306
        %v1308 = vlaneseq
        %v1309 = vshrl.u32 %v1308, 7
        %v1310 = vsub.s32 %v1307, %v1309
        %v1311 = vrot.slane %v1297, %v1310
        %v1312 = vcombine.low %v1289, %v1304
        %v1313 = vcombine.high %v1289, %v1304
        %v1315 = vunpack.c.l.s4 1934713408
        %v1316 = vunpack.c.0.s8 %v1315
        %v1317 = vlaneseq
        %v1318 = vshrl.u32 %v1317, 7
        %v1319 = vsub.s32 %v1316, %v1318
        %v1320 = vrot.slane %v1312, %v1319
        %v1322 = vunpack.c.l.s4 1934713408
        %v1323 = vunpack.c.0.s8 %v1322
        %v1324 = vlaneseq
        %v1325 = vshrl.u32 %v1324, 7
        %v1326 = vsub.s32 %v1323, %v1325
        %v1327 = vrot.slane %v1313, %v1326
        %v1328 = vcombine.low %v1296, %v1311
        %v1329 = vcombine.high %v1296, %v1311
        %v1331 = vunpack.c.l.s4 1934713408
        %v1332 = vunpack.c.0.s8 %v1331
        %v1333 = vlaneseq
        %v1334 = vshrl.u32 %v1333, 7
        %v1335 = vsub.s32 %v1332, %v1334
        %v1336 = vrot.slane %v1328, %v1335
        %v1338 = vunpack.c.l.s4 1934713408
        %v1339 = vunpack.c.0.s8 %v1338
        %v1340 = vlaneseq
        %v1341 = vshrl.u32 %v1340, 7
        %v1342 = vsub.s32 %v1339, %v1341
        %v1343 = vrot.slane %v1329, %v1342
        %v1344 = vcombine.high %v1320, 0.0
        %v1345 = vcombine.high %v1327, 0.0
        %v1346 = vcombine.high %v1336, 0.0
        %v1347 = vcombine.high %v1343, 0.0
        %v1348 = vcombine.high %v851, 0.0
        %v1350 = vunpack.c.l.s4 1983009808
        %v1351 = vunpack.c.0.s8 %v1350
        %v1352 = vlaneseq
        %v1353 = vshrl.u32 %v1352, 7
        %v1354 = vsub.s32 %v1351, %v1353
        %v1355 = vrot.slane %v851, %v1354
        %v1357 = vunpack.c.l.s4 1983009808
        %v1358 = vunpack.c.0.s8 %v1357
        %v1359 = vlaneseq
        %v1360 = vshrl.u32 %v1359, 7
        %v1361 = vsub.s32 %v1358, %v1360
        %v1362 = vrot.slane %v1348, %v1361
        %v1363 = vcombine.high %v877, 0.0
        %v1365 = vunpack.c.l.s4 1983009808
        %v1366 = vunpack.c.0.s8 %v1365
        %v1367 = vlaneseq
        %v1368 = vshrl.u32 %v1367, 7
        %v1369 = vsub.s32 %v1366, %v1368
        %v1370 = vrot.slane %v877, %v1369
        %v1372 = vunpack.c.l.s4 1983009808
        %v1373 = vunpack.c.0.s8 %v1372
        %v1374 = vlaneseq
        %v1375 = vshrl.u32 %v1374, 7
        %v1376 = vsub.s32 %v1373, %v1375
        %v1377 = vrot.slane %v1363, %v1376
        %v1378 = vcombine.low %v1355, %v1370
        %v1379 = vcombine.high %v1355, %v1370
        %v1381 = vunpack.c.l.s4 1934713408
        %v1382 = vunpack.c.0.s8 %v1381
        %v1383 = vlaneseq
        %v1384 = vshrl.u32 %v1383, 7
        %v1385 = vsub.s32 %v1382, %v1384
        %v1386 = vrot.slane %v1378, %v1385
        %v1388 = vunpack.c.l.s4 1934713408
        %v1389 = vunpack.c.0.s8 %v1388
        %v1390 = vlaneseq
        %v1391 = vshrl.u32 %v1390, 7
        %v1392 = vsub.s32 %v1389, %v1391
        %v1393 = vrot.slane %v1379, %v1392
        %v1394 = vcombine.low %v1362, %v1377
        %v1395 = vcombine.high %v1362, %v1377
        %v1397 = vunpack.c.l.s4 1934713408
        %v1398 = vunpack.c.0.s8 %v1397
        %v1399 = vlaneseq
        %v1400 = vshrl.u32 %v1399, 7
        %v1401 = vsub.s32 %v1398, %v1400
        %v1402 = vrot.slane %v1394, %v1401
        %v1404 = vunpack.c.l.s4 1934713408
        %v1405 = vunpack.c.0.s8 %v1404
        %v1406 = vlaneseq
        %v1407 = vshrl.u32 %v1406, 7
        %v1408 = vsub.s32 %v1405, %v1407
        %v1409 = vrot.slane %v1395, %v1408
        %v1410 = vcombine.high %v1386, 0.0
        %v1411 = vcombine.high %v1393, 0.0
        %v1412 = vcombine.high %v1402, 0.0
        %v1413 = vcombine.high %v1409, 0.0
        %v1414 = vcombine.low %v924, %v931
        %v1416 = vunpack.c.l.s4 1983009808
        %v1417 = vunpack.c.0.s8 %v1416
        %v1418 = vlaneseq
        %v1419 = vshrl.u32 %v1418, 7
        %v1420 = vsub.s32 %v1417, %v1419
        %v1421 = vrot.slane %v1414, %v1420
        %v1422 = vcombine.low %v948, %v949
        %v1424 = vunpack.c.l.s4 1983009808
        %v1425 = vunpack.c.0.s8 %v1424
        %v1426 = vlaneseq
        %v1427 = vshrl.u32 %v1426, 7
        %v1428 = vsub.s32 %v1425, %v1427
        %v1429 = vrot.slane %v1422, %v1428
        %v1430 = vcombine.low %v940, %v947
        %v1432 = vunpack.c.l.s4 1983009808
        %v1433 = vunpack.c.0.s8 %v1432
        %v1434 = vlaneseq
        %v1435 = vshrl.u32 %v1434, 7
        %v1436 = vsub.s32 %v1433, %v1435
        %v1437 = vrot.slane %v1430, %v1436
        %v1438 = vcombine.low %v950, %v951
        %v1440 = vunpack.c.l.s4 1983009808
        %v1441 = vunpack.c.0.s8 %v1440
        %v1442 = vlaneseq
        %v1443 = vshrl.u32 %v1442, 7
        %v1444 = vsub.s32 %v1441, %v1443
        %v1445 = vrot.slane %v1438, %v1444
        %v1446 = vcombine.low %v1421, %v1429
        %v1448 = vunpack.c.l.s4 1934713408
        %v1449 = vunpack.c.0.s8 %v1448
        %v1450 = vlaneseq
        %v1451 = vshrl.u32 %v1450, 7
        %v1452 = vsub.s32 %v1449, %v1451
        %v1453 = vrot.slane %v1446, %v1452
        %v1454 = vcombine.low %v1437, %v1445
        %v1456 = vunpack.c.l.s4 1934713408
        %v1457 = vunpack.c.0.s8 %v1456
        %v1458 = vlaneseq
        %v1459 = vshrl.u32 %v1458, 7
        %v1460 = vsub.s32 %v1457, %v1459
        %v1461 = vrot.slane %v1454, %v1460
        %v1462 = vcombine.low %v1453, %v1461
        %v1463 = vcombine.high %v1453, %v1461
        %v1464 = vcombine.low %v990, %v997
        %v1466 = vunpack.c.l.s4 1983009808
        %v1467 = vunpack.c.0.s8 %v1466
        %v1468 = vlaneseq
        %v1469 = vshrl.u32 %v1468, 7
        %v1470 = vsub.s32 %v1467, %v1469
        %v1471 = vrot.slane %v1464, %v1470
        %v1472 = vcombine.low %v1014, %v1015
        %v1474 = vunpack.c.l.s4 1983009808
        %v1475 = vunpack.c.0.s8 %v1474
        %v1476 = vlaneseq
        %v1477 = vshrl.u32 %v1476, 7
        %v1478 = vsub.s32 %v1475, %v1477
        %v1479 = vrot.slane %v1472, %v1478
        %v1480 = vcombine.low %v1006, %v1013
        %v1482 = vunpack.c.l.s4 1983009808
        %v1483 = vunpack.c.0.s8 %v1482
        %v1484 = vlaneseq
        %v1485 = vshrl.u32 %v1484, 7
        %v1486 = vsub.s32 %v1483, %v1485
        %v1487 = vrot.slane %v1480, %v1486
        %v1488 = vcombine.low %v1016, %v1017
        %v1490 = vunpack.c.l.s4 1983009808
        %v1491 = vunpack.c.0.s8 %v1490
        %v1492 = vlaneseq
        %v1493 = vshrl.u32 %v1492, 7
        %v1494 = vsub.s32 %v1491, %v1493
        %v1495 = vrot.slane %v1488, %v1494
        %v1496 = vcombine.low %v1471, %v1479
        %v1498 = vunpack.c.l.s4 1934713408
        %v1499 = vunpack.c.0.s8 %v1498
        %v1500 = vlaneseq
        %v1501 = vshrl.u32 %v1500, 7
        %v1502 = vsub.s32 %v1499, %v1501
        %v1503 = vrot.slane %v1496, %v1502
        %v1504 = vcombine.low %v1487, %v1495
        %v1506 = vunpack.c.l.s4 1934713408
        %v1507 = vunpack.c.0.s8 %v1506
        %v1508 = vlaneseq
        %v1509 = vshrl.u32 %v1508, 7
        %v1510 = vsub.s32 %v1507, %v1509
        %v1511 = vrot.slane %v1504, %v1510
        %v1512 = vcombine.low %v1503, %v1511
        %v1513 = vcombine.high %v1503, %v1511
        %v1514 = vcombine.low %v1056, %v1063
        %v1516 = vunpack.c.l.s4 1983009808
        %v1517 = vunpack.c.0.s8 %v1516
        %v1518 = vlaneseq
        %v1519 = vshrl.u32 %v1518, 7
        %v1520 = vsub.s32 %v1517, %v1519
        %v1521 = vrot.slane %v1514, %v1520
        %v1522 = vcombine.low %v1080, %v1081
        %v1524 = vunpack.c.l.s4 1983009808
        %v1525 = vunpack.c.0.s8 %v1524
        %v1526 = vlaneseq
        %v1527 = vshrl.u32 %v1526, 7
        %v1528 = vsub.s32 %v1525, %v1527
        %v1529 = vrot.slane %v1522, %v1528
        %v1530 = vcombine.low %v1072, %v1079
        %v1532 = vunpack.c.l.s4 1983009808
        %v1533 = vunpack.c.0.s8 %v1532
        %v1534 = vlaneseq
        %v1535 = vshrl.u32 %v1534, 7
        %v1536 = vsub.s32 %v1533, %v1535
        %v1537 = vrot.slane %v1530, %v1536
        %v1538 = vcombine.low %v1082, %v1083
        %v1540 = vunpack.c.l.s4 1983009808
        %v1541 = vunpack.c.0.s8 %v1540
        %v1542 = vlaneseq
        %v1543 = vshrl.u32 %v1542, 7
        %v1544 = vsub.s32 %v1541, %v1543
        %v1545 = vrot.slane %v1538, %v1544
        %v1546 = vcombine.low %v1521, %v1529
        %v1548 = vunpack.c.l.s4 1934713408
        %v1549 = vunpack.c.0.s8 %v1548
        %v1550 = vlaneseq
        %v1551 = vshrl.u32 %v1550, 7
        %v1552 = vsub.s32 %v1549, %v1551
        %v1553 = vrot.slane %v1546, %v1552
        %v1554 = vcombine.low %v1537, %v1545
        %v1556 = vunpack.c.l.s4 1934713408
        %v1557 = vunpack.c.0.s8 %v1556
        %v1558 = vlaneseq
        %v1559 = vshrl.u32 %v1558, 7
        %v1560 = vsub.s32 %v1557, %v1559
        %v1561 = vrot.slane %v1554, %v1560
        %v1562 = vcombine.low %v1553, %v1561
        %v1563 = vcombine.high %v1553, %v1561
        %v1564 = vcombine.low %v1122, %v1129
        %v1566 = vunpack.c.l.s4 1983009808
        %v1567 = vunpack.c.0.s8 %v1566
        %v1568 = vlaneseq
        %v1569 = vshrl.u32 %v1568, 7
        %v1570 = vsub.s32 %v1567, %v1569
        %v1571 = vrot.slane %v1564, %v1570
        %v1572 = vcombine.low %v1146, %v1147
        %v1574 = vunpack.c.l.s4 1983009808
        %v1575 = vunpack.c.0.s8 %v1574
        %v1576 = vlaneseq
        %v1577 = vshrl.u32 %v1576, 7
        %v1578 = vsub.s32 %v1575, %v1577
        %v1579 = vrot.slane %v1572, %v1578
        %v1580 = vcombine.low %v1138, %v1145
        %v1582 = vunpack.c.l.s4 1983009808
        %v1583 = vunpack.c.0.s8 %v1582
        %v1584 = vlaneseq
        %v1585 = vshrl.u32 %v1584, 7
        %v1586 = vsub.s32 %v1583, %v1585
        %v1587 = vrot.slane %v1580, %v1586
        %v1588 = vcombine.low %v1148, %v1149
        %v1590 = vunpack.c.l.s4 1983009808
        %v1591 = vunpack.c.0.s8 %v1590
        %v1592 = vlaneseq
        %v1593 = vshrl.u32 %v1592, 7
        %v1594 = vsub.s32 %v1591, %v1593
        %v1595 = vrot.slane %v1588, %v1594
        %v1596 = vcombine.low %v1571, %v1579
        %v1598 = vunpack.c.l.s4 1934713408
        %v1599 = vunpack.c.0.s8 %v1598
        %v1600 = vlaneseq
        %v1601 = vshrl.u32 %v1600, 7
        %v1602 = vsub.s32 %v1599, %v1601
        %v1603 = vrot.slane %v1596, %v1602
        %v1604 = vcombine.low %v1587, %v1595
        %v1606 = vunpack.c.l.s4 1934713408
        %v1607 = vunpack.c.0.s8 %v1606
        %v1608 = vlaneseq
        %v1609 = vshrl.u32 %v1608, 7
        %v1610 = vsub.s32 %v1607, %v1609
        %v1611 = vrot.slane %v1604, %v1610
        %v1612 = vcombine.low %v1603, %v1611
        %v1613 = vcombine.high %v1603, %v1611
        %v1614 = vcombine.low %v1188, %v1195
        %v1616 = vunpack.c.l.s4 1983009808
        %v1617 = vunpack.c.0.s8 %v1616
        %v1618 = vlaneseq
        %v1619 = vshrl.u32 %v1618, 7
        %v1620 = vsub.s32 %v1617, %v1619
        %v1621 = vrot.slane %v1614, %v1620
        %v1622 = vcombine.low %v1212, %v1213
        %v1624 = vunpack.c.l.s4 1983009808
        %v1625 = vunpack.c.0.s8 %v1624
        %v1626 = vlaneseq
        %v1627 = vshrl.u32 %v1626, 7
        %v1628 = vsub.s32 %v1625, %v1627
        %v1629 = vrot.slane %v1622, %v1628
        %v1630 = vcombine.low %v1204, %v1211
        %v1632 = vunpack.c.l.s4 1983009808
        %v1633 = vunpack.c.0.s8 %v1632
        %v1634 = vlaneseq
        %v1635 = vshrl.u32 %v1634, 7
        %v1636 = vsub.s32 %v1633, %v1635
        %v1637 = vrot.slane %v1630, %v1636
        %v1638 = vcombine.low %v1214, %v1215
        %v1640 = vunpack.c.l.s4 1983009808
        %v1641 = vunpack.c.0.s8 %v1640
        %v1642 = vlaneseq
        %v1643 = vshrl.u32 %v1642, 7
        %v1644 = vsub.s32 %v1641, %v1643
        %v1645 = vrot.slane %v1638, %v1644
        %v1646 = vcombine.low %v1621, %v1629
        %v1648 = vunpack.c.l.s4 1934713408
        %v1649 = vunpack.c.0.s8 %v1648
        %v1650 = vlaneseq
        %v1651 = vshrl.u32 %v1650, 7
        %v1652 = vsub.s32 %v1649, %v1651
        %v1653 = vrot.slane %v1646, %v1652
        %v1654 = vcombine.low %v1637, %v1645
        %v1656 = vunpack.c.l.s4 1934713408
        %v1657 = vunpack.c.0.s8 %v1656
        %v1658 = vlaneseq
        %v1659 = vshrl.u32 %v1658, 7
        %v1660 = vsub.s32 %v1657, %v1659
        %v1661 = vrot.slane %v1654, %v1660
        %v1662 = vcombine.low %v1653, %v1661
        %v1663 = vcombine.high %v1653, %v1661
        %v1664 = vcombine.low %v1254, %v1261
        %v1666 = vunpack.c.l.s4 1983009808
        %v1667 = vunpack.c.0.s8 %v1666
        %v1668 = vlaneseq
        %v1669 = vshrl.u32 %v1668, 7
        %v1670 = vsub.s32 %v1667, %v1669
        %v1671 = vrot.slane %v1664, %v1670
        %v1672 = vcombine.low %v1278, %v1279
        %v1674 = vunpack.c.l.s4 1983009808
        %v1675 = vunpack.c.0.s8 %v1674
        %v1676 = vlaneseq
        %v1677 = vshrl.u32 %v1676, 7
        %v1678 = vsub.s32 %v1675, %v1677
        %v1679 = vrot.slane %v1672, %v1678
        %v1680 = vcombine.low %v1270, %v1277
        %v1682 = vunpack.c.l.s4 1983009808
        %v1683 = vunpack.c.0.s8 %v1682
        %v1684 = vlaneseq
        %v1685 = vshrl.u32 %v1684, 7
        %v1686 = vsub.s32 %v1683, %v1685
        %v1687 = vrot.slane %v1680, %v1686
        %v1688 = vcombine.low %v1280, %v1281
        %v1690 = vunpack.c.l.s4 1983009808
        %v1691 = vunpack.c.0.s8 %v1690
        %v1692 = vlaneseq
        %v1693 = vshrl.u32 %v1692, 7
        %v1694 = vsub.s32 %v1691, %v1693
        %v1695 = vrot.slane %v1688, %v1694
        %v1696 = vcombine.low %v1671, %v1679
        %v1698 = vunpack.c.l.s4 1934713408
        %v1699 = vunpack.c.0.s8 %v1698
        %v1700 = vlaneseq
        %v1701 = vshrl.u32 %v1700, 7
        %v1702 = vsub.s32 %v1699, %v1701
        %v1703 = vrot.slane %v1696, %v1702
        %v1704 = vcombine.low %v1687, %v1695
        %v1706 = vunpack.c.l.s4 1934713408
        %v1707 = vunpack.c.0.s8 %v1706
        %v1708 = vlaneseq
        %v1709 = vshrl.u32 %v1708, 7
        %v1710 = vsub.s32 %v1707, %v1709
        %v1711 = vrot.slane %v1704, %v1710
        %v1712 = vcombine.low %v1703, %v1711
        %v1713 = vcombine.high %v1703, %v1711
        %v1714 = vcombine.low %v1320, %v1327
        %v1716 = vunpack.c.l.s4 1983009808
        %v1717 = vunpack.c.0.s8 %v1716
        %v1718 = vlaneseq
        %v1719 = vshrl.u32 %v1718, 7
        %v1720 = vsub.s32 %v1717, %v1719
        %v1721 = vrot.slane %v1714, %v1720
        %v1722 = vcombine.low %v1344, %v1345
        %v1724 = vunpack.c.l.s4 1983009808
        %v1725 = vunpack.c.0.s8 %v1724
        %v1726 = vlaneseq
        %v1727 = vshrl.u32 %v1726, 7
        %v1728 = vsub.s32 %v1725, %v1727
        %v1729 = vrot.slane %v1722, %v1728
        %v1730 = vcombine.low %v1336, %v1343
        %v1732 = vunpack.c.l.s4 1983009808
        %v1733 = vunpack.c.0.s8 %v1732
        %v1734 = vlaneseq
        %v1735 = vshrl.u32 %v1734, 7
        %v1736 = vsub.s32 %v1733, %v1735
        %v1737 = vrot.slane %v1730, %v1736
        %v1738 = vcombine.low %v1346, %v1347
        %v1740 = vunpack.c.l.s4 1983009808
        %v1741 = vunpack.c.0.s8 %v1740
        %v1742 = vlaneseq
        %v1743 = vshrl.u32 %v1742, 7
        %v1744 = vsub.s32 %v1741, %v1743
        %v1745 = vrot.slane %v1738, %v1744
        %v1746 = vcombine.low %v1721, %v1729
        %v1748 = vunpack.c.l.s4 1934713408
        %v1749 = vunpack.c.0.s8 %v1748
        %v1750 = vlaneseq
        %v1751 = vshrl.u32 %v1750, 7
        %v1752 = vsub.s32 %v1749, %v1751
        %v1753 = vrot.slane %v1746, %v1752
        %v1754 = vcombine.low %v1737, %v1745
        %v1756 = vunpack.c.l.s4 1934713408
        %v1757 = vunpack.c.0.s8 %v1756
        %v1758 = vlaneseq
        %v1759 = vshrl.u32 %v1758, 7
        %v1760 = vsub.s32 %v1757, %v1759
        %v1761 = vrot.slane %v1754, %v1760
        %v1762 = vcombine.low %v1753, %v1761
        %v1763 = vcombine.high %v1753, %v1761
        %v1764 = vcombine.low %v1386, %v1393
        %v1766 = vunpack.c.l.s4 1983009808
        %v1767 = vunpack.c.0.s8 %v1766
        %v1768 = vlaneseq
        %v1769 = vshrl.u32 %v1768, 7
        %v1770 = vsub.s32 %v1767, %v1769
        %v1771 = vrot.slane %v1764, %v1770
        %v1772 = vcombine.low %v1410, %v1411
        %v1774 = vunpack.c.l.s4 1983009808
        %v1775 = vunpack.c.0.s8 %v1774
        %v1776 = vlaneseq
        %v1777 = vshrl.u32 %v1776, 7
        %v1778 = vsub.s32 %v1775, %v1777
        %v1779 = vrot.slane %v1772, %v1778
        %v1780 = vcombine.low %v1402, %v1409
        %v1782 = vunpack.c.l.s4 1983009808
        %v1783 = vunpack.c.0.s8 %v1782
        %v1784 = vlaneseq
        %v1785 = vshrl.u32 %v1784, 7
        %v1786 = vsub.s32 %v1783, %v1785
        %v1787 = vrot.slane %v1780, %v1786
        %v1788 = vcombine.low %v1412, %v1413
        %v1790 = vunpack.c.l.s4 1983009808
        %v1791 = vunpack.c.0.s8 %v1790
        %v1792 = vlaneseq
        %v1793 = vshrl.u32 %v1792, 7
        %v1794 = vsub.s32 %v1791, %v1793
        %v1795 = vrot.slane %v1788, %v1794
        %v1796 = vcombine.low %v1771, %v1779
        %v1798 = vunpack.c.l.s4 1934713408
        %v1799 = vunpack.c.0.s8 %v1798
        %v1800 = vlaneseq
        %v1801 = vshrl.u32 %v1800, 7
        %v1802 = vsub.s32 %v1799, %v1801
        %v1803 = vrot.slane %v1796, %v1802
        %v1804 = vcombine.low %v1787, %v1795
        %v1806 = vunpack.c.l.s4 1934713408
        %v1807 = vunpack.c.0.s8 %v1806
        %v1808 = vlaneseq
        %v1809 = vshrl.u32 %v1808, 7
        %v1810 = vsub.s32 %v1807, %v1809
        %v1811 = vrot.slane %v1804, %v1810
        %v1812 = vcombine.low %v1803, %v1811
        %v1813 = vcombine.high %v1803, %v1811
        %v1814 = vcombine.low %v1462, %v1562
        %v1815 = vcombine.high %v1462, %v1562
        %v1817 = vunpack.c.l.s4 1983009808
        %v1818 = vunpack.c.0.s8 %v1817
        %v1819 = vlaneseq
        %v1820 = vshrl.u32 %v1819, 7
        %v1821 = vsub.s32 %v1818, %v1820
        %v1822 = vrot.slane %v1814, %v1821
        %v1824 = vunpack.c.l.s4 1983009808
        %v1825 = vunpack.c.0.s8 %v1824
        %v1826 = vlaneseq
        %v1827 = vshrl.u32 %v1826, 7
        %v1828 = vsub.s32 %v1825, %v1827
        %v1829 = vrot.slane %v1815, %v1828
        %v1830 = vcombine.low %v1512, %v1612
        %v1831 = vcombine.high %v1512, %v1612
        %v1833 = vunpack.c.l.s4 1983009808
        %v1834 = vunpack.c.0.s8 %v1833
        %v1835 = vlaneseq
        %v1836 = vshrl.u32 %v1835, 7
        %v1837 = vsub.s32 %v1834, %v1836
        %v1838 = vrot.slane %v1830, %v1837
        %v1840 = vunpack.c.l.s4 1983009808
        %v1841 = vunpack.c.0.s8 %v1840
        %v1842 = vlaneseq
        %v1843 = vshrl.u32 %v1842, 7
        %v1844 = vsub.s32 %v1841, %v1843
        %v1845 = vrot.slane %v1831, %v1844
        %v1846 = vcombine.low %v1662, %v1762
        %v1847 = vcombine.high %v1662, %v1762
        %v1849 = vunpack.c.l.s4 1983009808
        %v1850 = vunpack.c.0.s8 %v1849
        %v1851 = vlaneseq
        %v1852 = vshrl.u32 %v1851, 7
        %v1853 = vsub.s32 %v1850, %v1852
        %v1854 = vrot.slane %v1846, %v1853
        %v1856 = vunpack.c.l.s4 1983009808
        %v1857 = vunpack.c.0.s8 %v1856
        %v1858 = vlaneseq
        %v1859 = vshrl.u32 %v1858, 7
        %v1860 = vsub.s32 %v1857, %v1859
        %v1861 = vrot.slane %v1847, %v1860
        %v1862 = vcombine.low %v1712, %v1812
        %v1863 = vcombine.high %v1712, %v1812
        %v1865 = vunpack.c.l.s4 1983009808
        %v1866 = vunpack.c.0.s8 %v1865
        %v1867 = vlaneseq
        %v1868 = vshrl.u32 %v1867, 7
        %v1869 = vsub.s32 %v1866, %v1868
        %v1870 = vrot.slane %v1862, %v1869
        %v1872 = vunpack.c.l.s4 1983009808
        %v1873 = vunpack.c.0.s8 %v1872
        %v1874 = vlaneseq
        %v1875 = vshrl.u32 %v1874, 7
        %v1876 = vsub.s32 %v1873, %v1875
        %v1877 = vrot.slane %v1863, %v1876
        %v1878 = vcombine.low %v1822, %v1838
        %v1879 = vcombine.high %v1822, %v1838
        %v1881 = vunpack.c.l.s4 1934713408
        %v1882 = vunpack.c.0.s8 %v1881
        %v1883 = vlaneseq
        %v1884 = vshrl.u32 %v1883, 7
        %v1885 = vsub.s32 %v1882, %v1884
        %v1886 = vrot.slane %v1878, %v1885
        %v1888 = vunpack.c.l.s4 1934713408
        %v1889 = vunpack.c.0.s8 %v1888
        %v1890 = vlaneseq
        %v1891 = vshrl.u32 %v1890, 7
        %v1892 = vsub.s32 %v1889, %v1891
        %v1893 = vrot.slane %v1879, %v1892
        %v1894 = vcombine.low %v1829, %v1845
        %v1895 = vcombine.high %v1829, %v1845
        %v1897 = vunpack.c.l.s4 1934713408
        %v1898 = vunpack.c.0.s8 %v1897
        %v1899 = vlaneseq
        %v1900 = vshrl.u32 %v1899, 7
        %v1901 = vsub.s32 %v1898, %v1900
        %v1902 = vrot.slane %v1894, %v1901
        %v1904 = vunpack.c.l.s4 1934713408
        %v1905 = vunpack.c.0.s8 %v1904
        %v1906 = vlaneseq
        %v1907 = vshrl.u32 %v1906, 7
        %v1908 = vsub.s32 %v1905, %v1907
        %v1909 = vrot.slane %v1895, %v1908
        %v1910 = vcombine.low %v1854, %v1870
        %v1911 = vcombine.high %v1854, %v1870
        %v1913 = vunpack.c.l.s4 1934713408
        %v1914 = vunpack.c.0.s8 %v1913
        %v1915 = vlaneseq
        %v1916 = vshrl.u32 %v1915, 7
        %v1917 = vsub.s32 %v1914, %v1916
        %v1918 = vrot.slane %v1910, %v1917
        %v1920 = vunpack.c.l.s4 1934713408
        %v1921 = vunpack.c.0.s8 %v1920
        %v1922 = vlaneseq
        %v1923 = vshrl.u32 %v1922, 7
        %v1924 = vsub.s32 %v1921, %v1923
        %v1925 = vrot.slane %v1911, %v1924
        %v1926 = vcombine.low %v1861, %v1877
        %v1927 = vcombine.high %v1861, %v1877
        %v1929 = vunpack.c.l.s4 1934713408
        %v1930 = vunpack.c.0.s8 %v1929
        %v1931 = vlaneseq
        %v1932 = vshrl.u32 %v1931, 7
        %v1933 = vsub.s32 %v1930, %v1932
        %v1934 = vrot.slane %v1926, %v1933
        %v1936 = vunpack.c.l.s4 1934713408
        %v1937 = vunpack.c.0.s8 %v1936
        %v1938 = vlaneseq
        %v1939 = vshrl.u32 %v1938, 7
        %v1940 = vsub.s32 %v1937, %v1939
        %v1941 = vrot.slane %v1927, %v1940
        %v1942 = vcombine.low %v1886, %v1918
        %v1943 = vcombine.high %v1886, %v1918
        %v1944 = vcombine.low %v1893, %v1925
        %v1945 = vcombine.high %v1893, %v1925
        %v1946 = vcombine.low %v1902, %v1934
        %v1947 = vcombine.high %v1902, %v1934
        %v1948 = vcombine.low %v1909, %v1941
        %v1949 = vcombine.high %v1909, %v1941
        %v1950 = vcombine.low %v1463, %v1563
        %v1951 = vcombine.high %v1463, %v1563
        %v1953 = vunpack.c.l.s4 1983009808
        %v1954 = vunpack.c.0.s8 %v1953
        %v1955 = vlaneseq
        %v1956 = vshrl.u32 %v1955, 7
        %v1957 = vsub.s32 %v1954, %v1956
        %v1958 = vrot.slane %v1950, %v1957
        %v1960 = vunpack.c.l.s4 1983009808
        %v1961 = vunpack.c.0.s8 %v1960
        %v1962 = vlaneseq
        %v1963 = vshrl.u32 %v1962, 7
        %v1964 = vsub.s32 %v1961, %v1963
        %v1965 = vrot.slane %v1951, %v1964
        %v1966 = vcombine.low %v1513, %v1613
        %v1967 = vcombine.high %v1513, %v1613
        %v1969 = vunpack.c.l.s4 1983009808
        %v1970 = vunpack.c.0.s8 %v1969
        %v1971 = vlaneseq
        %v1972 = vshrl.u32 %v1971, 7
        %v1973 = vsub.s32 %v1970, %v1972
        %v1974 = vrot.slane %v1966, %v1973
        %v1976 = vunpack.c.l.s4 1983009808
        %v1977 = vunpack.c.0.s8 %v1976
        %v1978 = vlaneseq
        %v1979 = vshrl.u32 %v1978, 7
        %v1980 = vsub.s32 %v1977, %v1979
        %v1981 = vrot.slane %v1967, %v1980
        %v1982 = vcombine.low %v1663, %v1763
        %v1983 = vcombine.high %v1663, %v1763
        %v1985 = vunpack.c.l.s4 1983009808
        %v1986 = vunpack.c.0.s8 %v1985
        %v1987 = vlaneseq
        %v1988 = vshrl.u32 %v1987, 7
        %v1989 = vsub.s32 %v1986, %v1988
        %v1990 = vrot.slane %v1982, %v1989
        %v1992 = vunpack.c.l.s4 1983009808
        %v1993 = vunpack.c.0.s8 %v1992
        %v1994 = vlaneseq
        %v1995 = vshrl.u32 %v1994, 7
        %v1996 = vsub.s32 %v1993, %v1995
        %v1997 = vrot.slane %v1983, %v1996
        %v1998 = vcombine.low %v1713, %v1813
        %v1999 = vcombine.high %v1713, %v1813
        %v2001 = vunpack.c.l.s4 1983009808
        %v2002 = vunpack.c.0.s8 %v2001
        %v2003 = vlaneseq
        %v2004 = vshrl.u32 %v2003, 7
        %v2005 = vsub.s32 %v2002, %v2004
        %v2006 = vrot.slane %v1998, %v2005
        %v2008 = vunpack.c.l.s4 1983009808
        %v2009 = vunpack.c.0.s8 %v2008
        %v2010 = vlaneseq
        %v2011 = vshrl.u32 %v2010, 7
        %v2012 = vsub.s32 %v2009, %v2011
        %v2013 = vrot.slane %v1999, %v2012
        %v2014 = vcombine.low %v1958, %v1974
        %v2015 = vcombine.high %v1958, %v1974
        %v2017 = vunpack.c.l.s4 1934713408
        %v2018 = vunpack.c.0.s8 %v2017
        %v2019 = vlaneseq
        %v2020 = vshrl.u32 %v2019, 7
        %v2021 = vsub.s32 %v2018, %v2020
        %v2022 = vrot.slane %v2014, %v2021
        %v2024 = vunpack.c.l.s4 1934713408
        %v2025 = vunpack.c.0.s8 %v2024
        %v2026 = vlaneseq
        %v2027 = vshrl.u32 %v2026, 7
        %v2028 = vsub.s32 %v2025, %v2027
        %v2029 = vrot.slane %v2015, %v2028
        %v2030 = vcombine.low %v1965, %v1981
        %v2031 = vcombine.high %v1965, %v1981
        %v2033 = vunpack.c.l.s4 1934713408
        %v2034 = vunpack.c.0.s8 %v2033
        %v2035 = vlaneseq
        %v2036 = vshrl.u32 %v2035, 7
        %v2037 = vsub.s32 %v2034, %v2036
        %v2038 = vrot.slane %v2030, %v2037
        %v2040 = vunpack.c.l.s4 1934713408
        %v2041 = vunpack.c.0.s8 %v2040
        %v2042 = vlaneseq
        %v2043 = vshrl.u32 %v2042, 7
        %v2044 = vsub.s32 %v2041, %v2043
        %v2045 = vrot.slane %v2031, %v2044
        %v2046 = vcombine.low %v1990, %v2006
        %v2047 = vcombine.high %v1990, %v2006
        %v2049 = vunpack.c.l.s4 1934713408
        %v2050 = vunpack.c.0.s8 %v2049
        %v2051 = vlaneseq
        %v2052 = vshrl.u32 %v2051, 7
        %v2053 = vsub.s32 %v2050, %v2052
        %v2054 = vrot.slane %v2046, %v2053
        %v2056 = vunpack.c.l.s4 1934713408
        %v2057 = vunpack.c.0.s8 %v2056
        %v2058 = vlaneseq
        %v2059 = vshrl.u32 %v2058, 7
        %v2060 = vsub.s32 %v2057, %v2059
        %v2061 = vrot.slane %v2047, %v2060
        %v2062 = vcombine.low %v1997, %v2013
        %v2063 = vcombine.high %v1997, %v2013
        %v2065 = vunpack.c.l.s4 1934713408
        %v2066 = vunpack.c.0.s8 %v2065
        %v2067 = vlaneseq
        %v2068 = vshrl.u32 %v2067, 7
        %v2069 = vsub.s32 %v2066, %v2068
        %v2070 = vrot.slane %v2062, %v2069
        %v2072 = vunpack.c.l.s4 1934713408
        %v2073 = vunpack.c.0.s8 %v2072
        %v2074 = vlaneseq
        %v2075 = vshrl.u32 %v2074, 7
        %v2076 = vsub.s32 %v2073, %v2075
        %v2077 = vrot.slane %v2063, %v2076
        %v2078 = vcombine.low %v2022, %v2054
        %v2079 = vcombine.high %v2022, %v2054
        %v2080 = vcombine.low %v2029, %v2061
        %v2081 = vcombine.high %v2029, %v2061
        %v2082 = vcombine.low %v2038, %v2070
        %v2083 = vcombine.high %v2038, %v2070
        %v2084 = vcombine.low %v2045, %v2077
        %v2085 = vcombine.high %v2045, %v2077
        %2088 = vrot.lane.b32.xlu0 %v1943, 12
        %v2089 = vpop.permute.xlu0 %2088
        %2090 = vrot.lane.b32.xlu0 %v2079, 12
        %v2091 = vpop.permute.xlu0 %2090
        %2096 = vrot.lane.b32.xlu0 %v1944, 24
        %v2097 = vpop.permute.xlu0 %2096
        %2098 = vrot.lane.b32.xlu0 %v2080, 24
        %v2099 = vpop.permute.xlu0 %2098
        %2104 = vrot.lane.b32.xlu0 %v1945, 36
        %v2105 = vpop.permute.xlu0 %2104
        %2106 = vrot.lane.b32.xlu0 %v2081, 36
        %v2107 = vpop.permute.xlu0 %2106
        %2112 = vrot.lane.b32.xlu0 %v1946, 48
        %v2113 = vpop.permute.xlu0 %2112
        %2114 = vrot.lane.b32.xlu0 %v2082, 48
        %v2115 = vpop.permute.xlu0 %2114
        %2120 = vrot.lane.b32.xlu0 %v1947, 60
        %v2121 = vpop.permute.xlu0 %2120
        %2122 = vrot.lane.b32.xlu0 %v2083, 60
        %v2123 = vpop.permute.xlu0 %2122
        %2128 = vrot.lane.b32.xlu0 %v1948, 72
        %v2129 = vpop.permute.xlu0 %2128
        %2130 = vrot.lane.b32.xlu0 %v2084, 72
        %v2131 = vpop.permute.xlu0 %2130
        %2136 = vrot.lane.b32.xlu0 %v1949, 84
        %v2137 = vpop.permute.xlu0 %2136
        %2138 = vrot.lane.b32.xlu0 %v2085, 84
        %v2139 = vpop.permute.xlu0 %2138
        %v2142 = vsel %vm663, %v1942, %v2089
        %v2143 = vsel %vm663, %v2078, %v2091
        %vm2144 = vcmask 195584
        %v2145 = vsel %vm2144, %v2142, %v2097
        %v2146 = vsel %vm2144, %v2143, %v2099
        %vm2147 = vcmask 293888
        %v2148 = vsel %vm2147, %v2145, %v2105
        %v2149 = vsel %vm2147, %v2146, %v2107
        %vm2150 = vcmask 392192
        %v2151 = vsel %vm2150, %v2148, %v2113
        %v2152 = vsel %vm2150, %v2149, %v2115
        %vm2153 = vcmask 490496
        %v2154 = vsel %vm2153, %v2151, %v2121
        %v2155 = vsel %vm2153, %v2152, %v2123
        %vm2156 = vcmask 588800
        %v2157 = vsel %vm2156, %v2154, %v2129
        %v2158 = vsel %vm2156, %v2155, %v2131
        %vm2159 = vcmask 687104
        %v2160 = vsel %vm2159, %v2157, %v2137
        %v2161 = vsel %vm2159, %v2158, %v2139
        %vm2162 = vcmask 785408
        %2163 = vst.msk [vmem:[%s166] sm:$0xff] %vm2162, %v2160
        %2164 = vst.msk [vmem:[%s166 + $0x8] sm:$0xff] %vm2162, %v2161
        %s2165 = sand.u32 %s93, 1
        %s2166 = scalar_lea.sflag [#allocation3], %s2165
        %s2167 = sand.u32 %s93, 1
        %s2168 = smul.addr %s2167, 16
        %s2169 = scalar_lea.vmem [#allocation2], %s2168
        // Predicated region
        $region33: #{tpu_custom_call.1} parent=31 // pred_check
          %p2170 = pneg %p103
        $region34: #{tpu_custom_call.1} parent=31 // pred_check_branch
          %2172 = sbr.rel (%p2170) target = $region36
        $region35: #{tpu_custom_call.1} parent=31 // pred_region
          %s2173 = smul.u32 2, %s17
          %s2175 = ssub.s32 256, 256
          %2176 = vsyncadd %s2166, %s2175
          %s2177 = smul.addr %s2173, 128
          %s2178 = scalar_lea.hbm %s3, %s2177
          %s2179 = sshll.u32 %s2169, 4
          %s2180 = int_to_ptr.vmem [resolvable:$true] %s2179
          %2185 = dma.vmem_to_hbm [thread:$0]  %s2180, 256, %s2178, %s2166, 128, 128, 8
        $region36: #{tpu_custom_call.1} parent=31 // pred_fallthru
          _
      $region32: #{tpu_custom_call.1} parent=5 // pred_fallthru
        _
      %p2186 = scmp.le.s32.totalorder 2, %s12
      // Predicated region
      $region37: #{tpu_custom_call.1} parent=5 // pred_check
        %p2187 = pneg %p2186
      $region38: #{tpu_custom_call.1} parent=5 // pred_check_branch
        %2189 = sbr.rel (%p2187) target = $region40
      $region39: #{tpu_custom_call.1} parent=5 // pred_region
        %s2190 = ssub.s32 %s12, 2
        // Predicated region
        $region41: #{tpu_custom_call.1} parent=39 // pred_check
          %p2191 = pneg %p109
        $region42: #{tpu_custom_call.1} parent=39 // pred_check_branch
          %2193 = sbr.rel (%p2191) target = $region44
        $region43: #{tpu_custom_call.1} parent=39 // pred_region
          %s2194 = sand.u32 %s94, 1
          %s2195 = scalar_lea.sflag [#allocation3], %s2194
          %s2196 = sand.u32 %s94, 1
          %s2197 = smul.addr %s2196, 16
          %s2198 = scalar_lea.vmem [#allocation2], %s2197
          %2199 = dma.done %s2195, 256
        $region44: #{tpu_custom_call.1} parent=39 // pred_fallthru
          _
      $region40: #{tpu_custom_call.1} parent=5 // pred_fallthru
        _
    $region6: #{tpu_custom_call.1} parent=1 // loop_footer
      %s16 = sadd.s32 1, %s12
    $region7: #{tpu_custom_call.1} parent=1 // loop_footer_branch
      %11 = sbr.rel target = $region3
    $region8: #{tpu_custom_call.1} parent=1 // loop_exit
      _
    %2200 = vsyncpa [#allocation3], 1
    %s2201 = scalar_lea.sflag [#allocation3], 1
    %2202 = vsyncpa %s2201, 1

</llo_original>
